<compile_context>
chip_gen: v6e
topology: v6e:2x2x1
jax: 0.10.0
libtpu: 0.0.40
codegen_flags: <defaults>
</compile_context>

<pallas_src>
import functools

import jax
import jax.numpy as jnp
from jax import lax
from jax.experimental import pallas as pl
from jax.experimental.pallas import tpu as pltpu


def convblock_kernel(x_ref, w1_ref, t1_ref, w2_ref, t2_ref,
                     out_ref, xpad_ref, hpad_ref, *,
                     K, dil, pad, L, approx_silu):
    """One grid step: a block of B batch elements, channels-first.

    x_ref:    (B, Cin, Lw)      input block (input dtype, Lw = L rounded to 128)
    w1_ref:   (K, Cout, Cin)    conv1 weights, tap-major, BN1 scale folded in
    t1_ref:   (Cout, 1)         folded shift: s1*(b1 - mean1) + beta1   (f32)
    w2_ref:   (K, Cout, Cout)   conv2 weights, tap-major, BN2 scale folded in
    t2_ref:   (Cout, 1)         folded shift: s2*(b2 - mean2) + beta2   (f32)
    out_ref:  (B, Cout, Lw)     output block (out dtype)
    xpad_ref: (Cin,  B*(Lw+2*pad)) VMEM scratch, segmented + zero halos (compute dtype)
    hpad_ref: (Cout, B*(Lw+2*pad)) VMEM scratch, segmented + zero halos (compute dtype)
    """
    B = x_ref.shape[0]
    Cin = x_ref.shape[1]
    Lw = x_ref.shape[2]
    Cout = out_ref.shape[1]
    cdt = xpad_ref.dtype
    Lp = Lw + 2 * pad              # per-batch segment length in the scratches
    Ltot = B * Lp
    Lq = Ltot - 2 * pad            # lane length of the batched matmul outputs

    # ---- stage the x block into the segmented, zero-haloed scratch ----------
    for b in range(B):             # tiny staged copies (no matmuls in this loop)
        xpad_ref[:, pl.ds(b * Lp + pad, Lw)] = x_ref[b].astype(cdt)
    if pad > 0:
        zx = jnp.zeros((Cin, pad), cdt)
        for b in range(B):
            xpad_ref[:, pl.ds(b * Lp, pad)] = zx
            xpad_ref[:, pl.ds(b * Lp + pad + Lw, pad)] = zx
        zh = jnp.zeros((Cout, pad), cdt)
        hpad_ref[:, pl.ds(0, pad)] = zh
        hpad_ref[:, pl.ds(Ltot - pad, pad)] = zh

    # ---- conv1: K shifted (Cout,Cin) @ (Cin,Lq) MXU matmuls over ALL batch
    #      elements at once (each weight pushed once per tap, not per b) -------
    h = jnp.dot(w1_ref[0], xpad_ref[:, pl.ds(0, Lq)],
                preferred_element_type=jnp.float32)
    for k in range(1, K):
        h = h + jnp.dot(w1_ref[k], xpad_ref[:, pl.ds(k * dil, Lq)],
                        preferred_element_type=jnp.float32)
    h = h + t1_ref[...]                         # folded conv bias + BatchNorm1d

    # SiLU: exp on the EUP; reciprocal on the EUP (approx) in the low-precision
    # path, exact divide in the f32 path (bit-accuracy vs. the reference).
    z = 1.0 + jnp.exp(-h)
    if approx_silu:
        h = h * pl.reciprocal(z, approx=True)
    else:
        h = h / z

    # Columns past the real length L inside each segment must act as conv2's
    # zero padding (this also zeroes the inter-segment junk columns), so the
    # whole h can be stored with ONE lane-dense store.
    if L < Lp:
        q = lax.broadcasted_iota(jnp.int32, h.shape, 1)
        valid = q < L                                   # segment b = 0
        for b in range(1, B):
            valid = valid | ((q >= b * Lp) & (q < b * Lp + L))
        h = jnp.where(valid, h, 0.0)
    hpad_ref[:, pl.ds(pad, Lq)] = h.astype(cdt)

    # ---- conv2 ---------------------------------------------------------------
    y = jnp.dot(w2_ref[0], hpad_ref[:, pl.ds(0, Lq)],
                preferred_element_type=jnp.float32)
    for k in range(1, K):
        y = y + jnp.dot(w2_ref[k], hpad_ref[:, pl.ds(k * dil, Lq)],
                        preferred_element_type=jnp.float32)
    y = y + t2_ref[...]                         # single hoisted broadcast add

    # ---- residual add (at the INPUT precision) + lane-dense store ------------
    for b in range(B):
        yb = y[:, b * Lp: b * Lp + Lw]
        out_ref[b] = (yb + x_ref[b].astype(jnp.float32)).astype(out_ref.dtype)


def conv_block_forward(x_ncl, params, *, kernel_size, dilation,
                       batch_block=None, compute_dtype=jnp.float32,
                       out_dtype=None):
    """ConvBlock forward. x_ncl: (N, Cin, L) like PyTorch; returns (N, Cout, L).

    compute_dtype=bfloat16 is recommended on v5e/v6e/v7x (f32 accumulation).
    out_dtype defaults to the input dtype; pass bfloat16 to cut output HBM
    traffic ~25-33% when the consumer tolerates it.
    """
    N, Cin, L = x_ncl.shape
    Cout = params["w1"].shape[0]
    assert Cin == Cout, "residual add requires in_feat == out_feat (as in the PyTorch module)"
    assert (dilation * (kernel_size - 1)) % 2 == 0, \
        "length-preserving padding needs dilation*(kernel_size-1) to be even"
    pad = dilation * (kernel_size - 1) // 2
    K = kernel_size
    out_dtype = x_ncl.dtype if out_dtype is None else out_dtype
    eps = 1e-5

    # ---- fold BN (inference running stats) + conv bias into weights / shifts -
    s1 = params["gamma1"] / jnp.sqrt(params["var1"] + eps)          # (Cout,)
    s2 = params["gamma2"] / jnp.sqrt(params["var2"] + eps)
    # PyTorch weight (Cout, Cin, K) -> tap-major (K, Cout, Cin), BN scale folded
    w1 = (params["w1"] * s1[:, None, None]).transpose(2, 0, 1).astype(compute_dtype)
    w2 = (params["w2"] * s2[:, None, None]).transpose(2, 0, 1).astype(compute_dtype)
    t1 = (s1 * (params["b1"] - params["mean1"]) + params["beta1"]) \
        .reshape(Cout, 1).astype(jnp.float32)
    t2 = (s2 * (params["b2"] - params["mean2"]) + params["beta2"]) \
        .reshape(Cout, 1).astype(jnp.float32)

    # Lane-align L so every tap load / output store is unmasked and lane-dense.
    Lw = ((L + 127) // 128) * 128
    x = x_ncl if Lw == L else jnp.pad(x_ncl, ((0, 0), (0, 0), (0, Lw - L)))
    # x stays at its input dtype: the residual add keeps full precision; the
    # cast to compute_dtype happens only at the matmul operand inside the kernel.

    in_isz = jnp.dtype(x.dtype).itemsize
    c_isz = jnp.dtype(compute_dtype).itemsize
    o_isz = jnp.dtype(out_dtype).itemsize

    # ---- generation-aware VMEM sizing ----------------------------------------
    try:
        vmem_cap = int(pltpu.get_tpu_info().vmem_capacity_bytes)
    except Exception:
        vmem_cap = 64 * 2 ** 20          # conservative (v7x per-TensorCore)

    def step_bytes(B):
        Ltot = B * (Lw + 2 * pad)
        return (2 * B * Cin * Lw * in_isz            # x block, double-buffered
                + 2 * B * Cout * Lw * o_isz          # out block, double-buffered
                + 2 * K * (Cin + Cout) * Cout * c_isz + 16 * Cout  # weights/shifts
                + (Cin + Cout) * Ltot * c_isz        # xpad / hpad scratch
                + 2 * Cout * Ltot * 4)               # live f32 h / y intermediates

    budget = int(0.55 * vmem_cap)
    if batch_block is None:
        min_steps = min(4, N)            # keep the DMA pipeline busy
        cands = [d for d in range(1, min(N, 8) + 1)
                 if N % d == 0 and N // d >= min_steps and step_bytes(d) <= budget]
        if not cands:
            cands = [1]
        even = [d for d in cands if (N // d) % 2 == 0]   # megacore-friendly grid
        batch_block = max(even) if even else max(cands)
    B = batch_block
    assert N % B == 0, "batch_block must divide N"

    vmem_limit = int(min(0.75 * vmem_cap, max(32 * 2 ** 20, 1.5 * step_bytes(B))))

    kern = functools.partial(
        convblock_kernel, K=K, dil=dilation, pad=pad, L=L,
        approx_silu=(jnp.dtype(compute_dtype) != jnp.dtype(jnp.float32)))

    out = pl.pallas_call(
        kern,
        out_shape=jax.ShapeDtypeStruct((N, Cout, Lw), out_dtype),
        grid_spec=pltpu.PrefetchScalarGridSpec(
            num_scalar_prefetch=0,
            grid=(N // B,),
            in_specs=[
                pl.BlockSpec((B, Cin, Lw), lambda i: (i, 0, 0)),
                pl.BlockSpec((K, Cout, Cin), lambda i: (0, 0, 0)),
                pl.BlockSpec((Cout, 1), lambda i: (0, 0)),
                pl.BlockSpec((K, Cout, Cout), lambda i: (0, 0, 0)),
                pl.BlockSpec((Cout, 1), lambda i: (0, 0)),
            ],
            out_specs=pl.BlockSpec((B, Cout, Lw), lambda i: (i, 0, 0)),
            scratch_shapes=[
                pltpu.VMEM((Cin, B * (Lw + 2 * pad)), compute_dtype),
                pltpu.VMEM((Cout, B * (Lw + 2 * pad)), compute_dtype),
            ],
        ),
        compiler_params=pltpu.CompilerParams(
            dimension_semantics=("parallel",),
            vmem_limit_bytes=vmem_limit),
    )(x, w1, t1, w2, t2)

    return out if Lw == L else out[:, :, :L]


def ref_forward(x_ncl, params, *, kernel_size, dilation):
    """Pure-JAX reference (lax.conv_general_dilated) matching the PyTorch module."""
    pad = dilation * (kernel_size - 1) // 2
    eps = 1e-5
    dn = ("NCH", "OIH", "NCH")

    def bn(y, g, b, m, v):
        return (y - m[None, :, None]) / jnp.sqrt(v[None, :, None] + eps) \
               * g[None, :, None] + b[None, :, None]

    y = lax.conv_general_dilated(x_ncl, params["w1"], (1,), [(pad, pad)],
                                 rhs_dilation=(dilation,), dimension_numbers=dn)
    y = y + params["b1"][None, :, None]
    y = bn(y, params["gamma1"], params["beta1"], params["mean1"], params["var1"])
    y = y * jax.nn.sigmoid(y)
    z = lax.conv_general_dilated(y, params["w2"], (1,), [(pad, pad)],
                                 rhs_dilation=(dilation,), dimension_numbers=dn)
    z = z + params["b2"][None, :, None]
    z = bn(z, params["gamma2"], params["beta2"], params["mean2"], params["var2"])
    return z + x_ncl


if __name__ == "__main__":
    # residual add requires out_feat == in_feat and stride == 1
    in_feat = out_feat = 4
    kernel_size = 3
    dilation = 2

    key = jax.random.PRNGKey(0)
    keys = jax.random.split(key, 12)
    fan_out = out_feat * kernel_size                    # kaiming fan_out, relu
    std = (2.0 / fan_out) ** 0.5
    params = dict(
        w1=std * jax.random.normal(keys[0], (out_feat, in_feat, kernel_size), jnp.float32),
        b1=jnp.zeros((out_feat,), jnp.float32),
        gamma1=1.0 + 0.1 * jax.random.normal(keys[1], (out_feat,), jnp.float32),
        beta1=0.1 * jax.random.normal(keys[2], (out_feat,), jnp.float32),
        mean1=0.1 * jax.random.normal(keys[3], (out_feat,), jnp.float32),
        var1=1.0 + 0.1 * jnp.abs(jax.random.normal(keys[4], (out_feat,), jnp.float32)),
        w2=std * jax.random.normal(keys[5], (out_feat, out_feat, kernel_size), jnp.float32),
        b2=jnp.zeros((out_feat,), jnp.float32),
        gamma2=1.0 + 0.1 * jax.random.normal(keys[6], (out_feat,), jnp.float32),
        beta2=0.1 * jax.random.normal(keys[7], (out_feat,), jnp.float32),
        mean2=0.1 * jax.random.normal(keys[8], (out_feat,), jnp.float32),
        var2=1.0 + 0.1 * jnp.abs(jax.random.normal(keys[9], (out_feat,), jnp.float32)),
    )

    # ---- test 1: f32 compute, lane-aligned L, batched grid (N=8 -> grid 4, B=2)
    N, L = 8, 128
    x = jax.random.normal(keys[10], (N, in_feat, L), jnp.float32)   # NCL, like PyTorch
    ref = ref_forward(x, params, kernel_size=kernel_size, dilation=dilation)
    out = conv_block_forward(x, params, kernel_size=kernel_size, dilation=dilation,
                             compute_dtype=jnp.float32)
    out = jax.block_until_ready(out)
    assert out.shape == ref.shape == x.shape
    assert jnp.allclose(out, ref, atol=1e-4, rtol=1e-4), \
        f"f32 max abs err = {float(jnp.max(jnp.abs(out - ref)))}"

    # ---- test 2: f32 compute, L NOT a multiple of 128 (exercises the lane-pad
    #      + tail-masking path and its boundary handling), N=2 -> grid 2, B=1.
    N2, L2 = 2, 100
    x2 = jax.random.normal(keys[11], (N2, in_feat, L2), jnp.float32)
    ref2 = ref_forward(x2, params, kernel_size=kernel_size, dilation=dilation)
    out2 = conv_block_forward(x2, params, kernel_size=kernel_size, dilation=dilation,
                              compute_dtype=jnp.float32)
    out2 = jax.block_until_ready(out2)
    assert out2.shape == ref2.shape == x2.shape
    assert jnp.allclose(out2, ref2, atol=1e-4, rtol=1e-4), \
        f"f32 (padded-L) max abs err = {float(jnp.max(jnp.abs(out2 - ref2)))}"

    # ---- test 3: bf16 MXU path with bf16 output (recommended mem-bound config)
    out_bf16 = conv_block_forward(x, params, kernel_size=kernel_size, dilation=dilation,
                                  compute_dtype=jnp.bfloat16, out_dtype=jnp.bfloat16)
    out_bf16 = jax.block_until_ready(out_bf16)
    assert out_bf16.dtype == jnp.bfloat16
    assert jnp.allclose(out_bf16.astype(jnp.float32), ref, atol=1e-1, rtol=1e-1), \
        f"bf16 max abs err = {float(jnp.max(jnp.abs(out_bf16.astype(jnp.float32) - ref)))}"

    print("KERNEL_OK")
</pallas_src>

<mosaic_0001>
module attributes {stable_mosaic.version = 11 : i64} {
  func.func @convblock_kernel(%arg0: i32, %arg1: memref<2x4x128xf32, #tpu.memory_space<vmem>>, %arg2: memref<3x4x4xf32, #tpu.memory_space<vmem>>, %arg3: memref<4x1xf32, #tpu.memory_space<vmem>>, %arg4: memref<3x4x4xf32, #tpu.memory_space<vmem>>, %arg5: memref<4x1xf32, #tpu.memory_space<vmem>>, %arg6: memref<2x4x128xf32, #tpu.memory_space<vmem>>, %arg7: memref<4x264xf32, #tpu.memory_space<vmem>>, %arg8: memref<4x264xf32, #tpu.memory_space<vmem>>) attributes {dimension_semantics = [#tpu.dimension_semantics<parallel>], iteration_bounds = array<i64: 4>, scalar_prefetch = 0 : i64, scratch_operands = 2 : i64, tpu.core_type = #tpu.core_type<tc>, window_params = [{transform_indices = @transform_0, window_bounds = array<i64: 2, 4, 128>}, {pipeline_mode = #tpu.pipeline_mode<synchronous>, transform_indices = @transform_1, window_bounds = array<i64: 3, 4, 4>}, {pipeline_mode = #tpu.pipeline_mode<synchronous>, transform_indices = @transform_2, window_bounds = array<i64: 4, 1>}, {pipeline_mode = #tpu.pipeline_mode<synchronous>, transform_indices = @transform_3, window_bounds = array<i64: 3, 4, 4>}, {pipeline_mode = #tpu.pipeline_mode<synchronous>, transform_indices = @transform_4, window_bounds = array<i64: 4, 1>}, {transform_indices = @transform_5, window_bounds = array<i64: 2, 4, 128>}]} {
    %c0 = arith.constant 0 : index
    %c0_0 = arith.constant 0 : index
    %c0_1 = arith.constant 0 : index
    %0 = vector.load %arg1[%c0, %c0_0, %c0_1] : memref<2x4x128xf32, #tpu.memory_space<vmem>>, vector<1x4x128xf32>
    %1 = vector.shape_cast %0 : vector<1x4x128xf32> to vector<4x128xf32>
    %c0_2 = arith.constant 0 : index
    %c2 = arith.constant 2 : index
    %2 = vector.load %arg7[%c0_2, %c2] : memref<4x264xf32, #tpu.memory_space<vmem>>, vector<4x128xf32>
    tpu.vector_store %arg7[%c0_2, %c2], %1 {strides = array<i32>} : memref<4x264xf32, #tpu.memory_space<vmem>>, vector<4x128xf32>,
    %c1 = arith.constant 1 : index
    %c0_3 = arith.constant 0 : index
    %c0_4 = arith.constant 0 : index
    %3 = vector.load %arg1[%c1, %c0_3, %c0_4] : memref<2x4x128xf32, #tpu.memory_space<vmem>>, vector<1x4x128xf32>
    %4 = vector.shape_cast %3 : vector<1x4x128xf32> to vector<4x128xf32>
    %c0_5 = arith.constant 0 : index
    %c134 = arith.constant 134 : index
    %5 = vector.load %arg7[%c0_5, %c134] : memref<4x264xf32, #tpu.memory_space<vmem>>, vector<4x128xf32>
    tpu.vector_store %arg7[%c0_5, %c134], %4 {strides = array<i32>} : memref<4x264xf32, #tpu.memory_space<vmem>>, vector<4x128xf32>,
    %cst = arith.constant 0.000000e+00 : f32
    %6 = vector.broadcast %cst : f32 to vector<4x2xf32>
    %c0_6 = arith.constant 0 : index
    %c0_7 = arith.constant 0 : index
    %7 = vector.load %arg7[%c0_6, %c0_7] : memref<4x264xf32, #tpu.memory_space<vmem>>, vector<4x2xf32>
    tpu.vector_store %arg7[%c0_6, %c0_7], %6 {strides = array<i32>} : memref<4x264xf32, #tpu.memory_space<vmem>>, vector<4x2xf32>,
    %c0_8 = arith.constant 0 : index
    %c130 = arith.constant 130 : index
    %8 = vector.load %arg7[%c0_8, %c130] : memref<4x264xf32, #tpu.memory_space<vmem>>, vector<4x2xf32>
    tpu.vector_store %arg7[%c0_8, %c130], %6 {strides = array<i32>} : memref<4x264xf32, #tpu.memory_space<vmem>>, vector<4x2xf32>,
    %c0_9 = arith.constant 0 : index
    %c132 = arith.constant 132 : index
    %9 = vector.load %arg7[%c0_9, %c132] : memref<4x264xf32, #tpu.memory_space<vmem>>, vector<4x2xf32>
    tpu.vector_store %arg7[%c0_9, %c132], %6 {strides = array<i32>} : memref<4x264xf32, #tpu.memory_space<vmem>>, vector<4x2xf32>,
    %c0_10 = arith.constant 0 : index
    %c262 = arith.constant 262 : index
    %10 = vector.load %arg7[%c0_10, %c262] : memref<4x264xf32, #tpu.memory_space<vmem>>, vector<4x2xf32>
    tpu.vector_store %arg7[%c0_10, %c262], %6 {strides = array<i32>} : memref<4x264xf32, #tpu.memory_space<vmem>>, vector<4x2xf32>,
    %cst_11 = arith.constant 0.000000e+00 : f32
    %11 = vector.broadcast %cst_11 : f32 to vector<4x2xf32>
    %c0_12 = arith.constant 0 : index
    %c0_13 = arith.constant 0 : index
    %12 = vector.load %arg8[%c0_12, %c0_13] : memref<4x264xf32, #tpu.memory_space<vmem>>, vector<4x2xf32>
    tpu.vector_store %arg8[%c0_12, %c0_13], %11 {strides = array<i32>} : memref<4x264xf32, #tpu.memory_space<vmem>>, vector<4x2xf32>,
    %c0_14 = arith.constant 0 : index
    %c262_15 = arith.constant 262 : index
    %13 = vector.load %arg8[%c0_14, %c262_15] : memref<4x264xf32, #tpu.memory_space<vmem>>, vector<4x2xf32>
    tpu.vector_store %arg8[%c0_14, %c262_15], %11 {strides = array<i32>} : memref<4x264xf32, #tpu.memory_space<vmem>>, vector<4x2xf32>,
    %c0_16 = arith.constant 0 : index
    %c0_17 = arith.constant 0 : index
    %c0_18 = arith.constant 0 : index
    %14 = vector.load %arg2[%c0_16, %c0_17, %c0_18] : memref<3x4x4xf32, #tpu.memory_space<vmem>>, vector<1x4x4xf32>
    %15 = vector.shape_cast %14 : vector<1x4x4xf32> to vector<4x4xf32>
    %c0_19 = arith.constant 0 : index
    %c0_20 = arith.constant 0 : index
    %16 = vector.load %arg7[%c0_19, %c0_20] : memref<4x264xf32, #tpu.memory_space<vmem>>, vector<4x260xf32>
    %cst_21 = arith.constant dense<0.000000e+00> : vector<4x260xf32>
    %17 = tpu.matmul %15, %16, %cst_21 {dimension_numbers = #tpu.dot_dimension_numbers<[1], [0], [0], [1], [0, 0, 1, 1], [], []>} : vector<4x4xf32>, vector<4x260xf32>, vector<4x260xf32> -> vector<4x260xf32>
    %c1_22 = arith.constant 1 : index
    %c0_23 = arith.constant 0 : index
    %c0_24 = arith.constant 0 : index
    %18 = vector.load %arg2[%c1_22, %c0_23, %c0_24] : memref<3x4x4xf32, #tpu.memory_space<vmem>>, vector<1x4x4xf32>
    %19 = vector.shape_cast %18 : vector<1x4x4xf32> to vector<4x4xf32>
    %c0_25 = arith.constant 0 : index
    %c2_26 = arith.constant 2 : index
    %20 = vector.load %arg7[%c0_25, %c2_26] : memref<4x264xf32, #tpu.memory_space<vmem>>, vector<4x260xf32>
    %cst_27 = arith.constant dense<0.000000e+00> : vector<4x260xf32>
    %21 = tpu.matmul %19, %20, %cst_27 {dimension_numbers = #tpu.dot_dimension_numbers<[1], [0], [0], [1], [0, 0, 1, 1], [], []>} : vector<4x4xf32>, vector<4x260xf32>, vector<4x260xf32> -> vector<4x260xf32>
    %22 = arith.addf %17, %21 : vector<4x260xf32>
    %c2_28 = arith.constant 2 : index
    %c0_29 = arith.constant 0 : index
    %c0_30 = arith.constant 0 : index
    %23 = vector.load %arg2[%c2_28, %c0_29, %c0_30] : memref<3x4x4xf32, #tpu.memory_space<vmem>>, vector<1x4x4xf32>
    %24 = vector.shape_cast %23 : vector<1x4x4xf32> to vector<4x4xf32>
    %c0_31 = arith.constant 0 : index
    %c4 = arith.constant 4 : index
    %25 = vector.load %arg7[%c0_31, %c4] : memref<4x264xf32, #tpu.memory_space<vmem>>, vector<4x260xf32>
    %cst_32 = arith.constant dense<0.000000e+00> : vector<4x260xf32>
    %26 = tpu.matmul %24, %25, %cst_32 {dimension_numbers = #tpu.dot_dimension_numbers<[1], [0], [0], [1], [0, 0, 1, 1], [], []>} : vector<4x4xf32>, vector<4x260xf32>, vector<4x260xf32> -> vector<4x260xf32>
    %27 = arith.addf %22, %26 : vector<4x260xf32>
    %c0_33 = arith.constant 0 : index
    %c0_34 = arith.constant 0 : index
    %28 = vector.load %arg3[%c0_33, %c0_34] : memref<4x1xf32, #tpu.memory_space<vmem>>, vector<4x1xf32>
    %29 = vector.broadcast %28 : vector<4x1xf32> to vector<4x260xf32>
    %30 = arith.addf %27, %29 : vector<4x260xf32>
    %cst_35 = arith.constant 0.000000e+00 : f32
    %31 = vector.broadcast %cst_35 : f32 to vector<4x260xf32>
    %32 = arith.subf %31, %30 : vector<4x260xf32>
    %33 = math.exp %32 : vector<4x260xf32>
    %cst_36 = arith.constant 1.000000e+00 : f32
    %34 = vector.broadcast %cst_36 : f32 to vector<4x260xf32>
    %35 = arith.addf %34, %33 : vector<4x260xf32>
    %36 = arith.divf %30, %35 : vector<4x260xf32>
    %37 = tpu.iota {dimensions = array<i32: 1>} : vector<4x260xi32>
    %c128_i32 = arith.constant 128 : i32
    %38 = vector.broadcast %c128_i32 : i32 to vector<4x260xi32>
    %39 = arith.cmpi slt, %37, %38 : vector<4x260xi32>
    %c132_i32 = arith.constant 132 : i32
    %40 = vector.broadcast %c132_i32 : i32 to vector<4x260xi32>
    %41 = arith.cmpi sge, %37, %40 : vector<4x260xi32>
    %c260_i32 = arith.constant 260 : i32
    %42 = vector.broadcast %c260_i32 : i32 to vector<4x260xi32>
    %43 = arith.cmpi slt, %37, %42 : vector<4x260xi32>
    %44 = arith.andi %41, %43 : vector<4x260xi1>
    %45 = arith.ori %39, %44 : vector<4x260xi1>
    %cst_37 = arith.constant 0.000000e+00 : f32
    %46 = vector.broadcast %cst_37 : f32 to vector<4x260xf32>
    %47 = arith.select %45, %36, %46 : vector<4x260xi1>, vector<4x260xf32>
    %c0_38 = arith.constant 0 : index
    %c2_39 = arith.constant 2 : index
    %48 = vector.load %arg8[%c0_38, %c2_39] : memref<4x264xf32, #tpu.memory_space<vmem>>, vector<4x260xf32>
    tpu.vector_store %arg8[%c0_38, %c2_39], %47 {strides = array<i32>} : memref<4x264xf32, #tpu.memory_space<vmem>>, vector<4x260xf32>,
    %c0_40 = arith.constant 0 : index
    %c0_41 = arith.constant 0 : index
    %c0_42 = arith.constant 0 : index
    %49 = vector.load %arg4[%c0_40, %c0_41, %c0_42] : memref<3x4x4xf32, #tpu.memory_space<vmem>>, vector<1x4x4xf32>
    %50 = vector.shape_cast %49 : vector<1x4x4xf32> to vector<4x4xf32>
    %c0_43 = arith.constant 0 : index
    %c0_44 = arith.constant 0 : index
    %51 = vector.load %arg8[%c0_43, %c0_44] : memref<4x264xf32, #tpu.memory_space<vmem>>, vector<4x260xf32>
    %cst_45 = arith.constant dense<0.000000e+00> : vector<4x260xf32>
    %52 = tpu.matmul %50, %51, %cst_45 {dimension_numbers = #tpu.dot_dimension_numbers<[1], [0], [0], [1], [0, 0, 1, 1], [], []>} : vector<4x4xf32>, vector<4x260xf32>, vector<4x260xf32> -> vector<4x260xf32>
    %c1_46 = arith.constant 1 : index
    %c0_47 = arith.constant 0 : index
    %c0_48 = arith.constant 0 : index
    %53 = vector.load %arg4[%c1_46, %c0_47, %c0_48] : memref<3x4x4xf32, #tpu.memory_space<vmem>>, vector<1x4x4xf32>
    %54 = vector.shape_cast %53 : vector<1x4x4xf32> to vector<4x4xf32>
    %c0_49 = arith.constant 0 : index
    %c2_50 = arith.constant 2 : index
    %55 = vector.load %arg8[%c0_49, %c2_50] : memref<4x264xf32, #tpu.memory_space<vmem>>, vector<4x260xf32>
    %cst_51 = arith.constant dense<0.000000e+00> : vector<4x260xf32>
    %56 = tpu.matmul %54, %55, %cst_51 {dimension_numbers = #tpu.dot_dimension_numbers<[1], [0], [0], [1], [0, 0, 1, 1], [], []>} : vector<4x4xf32>, vector<4x260xf32>, vector<4x260xf32> -> vector<4x260xf32>
    %57 = arith.addf %52, %56 : vector<4x260xf32>
    %c2_52 = arith.constant 2 : index
    %c0_53 = arith.constant 0 : index
    %c0_54 = arith.constant 0 : index
    %58 = vector.load %arg4[%c2_52, %c0_53, %c0_54] : memref<3x4x4xf32, #tpu.memory_space<vmem>>, vector<1x4x4xf32>
    %59 = vector.shape_cast %58 : vector<1x4x4xf32> to vector<4x4xf32>
    %c0_55 = arith.constant 0 : index
    %c4_56 = arith.constant 4 : index
    %60 = vector.load %arg8[%c0_55, %c4_56] : memref<4x264xf32, #tpu.memory_space<vmem>>, vector<4x260xf32>
    %cst_57 = arith.constant dense<0.000000e+00> : vector<4x260xf32>
    %61 = tpu.matmul %59, %60, %cst_57 {dimension_numbers = #tpu.dot_dimension_numbers<[1], [0], [0], [1], [0, 0, 1, 1], [], []>} : vector<4x4xf32>, vector<4x260xf32>, vector<4x260xf32> -> vector<4x260xf32>
    %62 = arith.addf %57, %61 : vector<4x260xf32>
    %c0_58 = arith.constant 0 : index
    %c0_59 = arith.constant 0 : index
    %63 = vector.load %arg5[%c0_58, %c0_59] : memref<4x1xf32, #tpu.memory_space<vmem>>, vector<4x1xf32>
    %64 = vector.broadcast %63 : vector<4x1xf32> to vector<4x260xf32>
    %65 = arith.addf %62, %64 : vector<4x260xf32>
    %66 = vector.extract_strided_slice %65 {offsets = [0, 0], sizes = [4, 128], strides = [1, 1]} : vector<4x260xf32> to vector<4x128xf32>
    %c0_60 = arith.constant 0 : index
    %c0_61 = arith.constant 0 : index
    %c0_62 = arith.constant 0 : index
    %67 = vector.load %arg1[%c0_60, %c0_61, %c0_62] : memref<2x4x128xf32, #tpu.memory_space<vmem>>, vector<1x4x128xf32>
    %68 = vector.shape_cast %67 : vector<1x4x128xf32> to vector<4x128xf32>
    %69 = arith.addf %66, %68 : vector<4x128xf32>
    %c0_63 = arith.constant 0 : index
    %c0_64 = arith.constant 0 : index
    %c0_65 = arith.constant 0 : index
    %70 = vector.load %arg6[%c0_63, %c0_64, %c0_65] : memref<2x4x128xf32, #tpu.memory_space<vmem>>, vector<1x4x128xf32>
    %71 = vector.shape_cast %70 : vector<1x4x128xf32> to vector<4x128xf32>
    %72 = vector.shape_cast %69 : vector<4x128xf32> to vector<1x4x128xf32>
    tpu.vector_store %arg6[%c0_63, %c0_64, %c0_65], %72 {strides = array<i32>} : memref<2x4x128xf32, #tpu.memory_space<vmem>>, vector<1x4x128xf32>,
    %73 = vector.extract_strided_slice %65 {offsets = [0, 132], sizes = [4, 128], strides = [1, 1]} : vector<4x260xf32> to vector<4x128xf32>
    %c1_66 = arith.constant 1 : index
    %c0_67 = arith.constant 0 : index
    %c0_68 = arith.constant 0 : index
    %74 = vector.load %arg1[%c1_66, %c0_67, %c0_68] : memref<2x4x128xf32, #tpu.memory_space<vmem>>, vector<1x4x128xf32>
    %75 = vector.shape_cast %74 : vector<1x4x128xf32> to vector<4x128xf32>
    %76 = arith.addf %73, %75 : vector<4x128xf32>
    %c1_69 = arith.constant 1 : index
    %c0_70 = arith.constant 0 : index
    %c0_71 = arith.constant 0 : index
    %77 = vector.load %arg6[%c1_69, %c0_70, %c0_71] : memref<2x4x128xf32, #tpu.memory_space<vmem>>, vector<1x4x128xf32>
    %78 = vector.shape_cast %77 : vector<1x4x128xf32> to vector<4x128xf32>
    %79 = vector.shape_cast %76 : vector<4x128xf32> to vector<1x4x128xf32>
    tpu.vector_store %arg6[%c1_69, %c0_70, %c0_71], %79 {strides = array<i32>} : memref<2x4x128xf32, #tpu.memory_space<vmem>>, vector<1x4x128xf32>,
    return
  }
  func.func @transform_0(%arg0: i32) -> (i32, i32, i32) {
    %c0_i32 = arith.constant 0 : i32
    %c0_i32_0 = arith.constant 0 : i32
    %c0_i32_1 = arith.constant 0 : i32
    return %arg0, %c0_i32, %c0_i32_0 : i32, i32, i32
  }
  func.func @transform_1(%arg0: i32) -> (i32, i32, i32) {
    %c0_i32 = arith.constant 0 : i32
    %c0_i32_0 = arith.constant 0 : i32
    %c0_i32_1 = arith.constant 0 : i32
    %c0_i32_2 = arith.constant 0 : i32
    return %c0_i32, %c0_i32_0, %c0_i32_1 : i32, i32, i32
  }
  func.func @transform_2(%arg0: i32) -> (i32, i32) {
    %c0_i32 = arith.constant 0 : i32
    %c0_i32_0 = arith.constant 0 : i32
    %c0_i32_1 = arith.constant 0 : i32
    return %c0_i32, %c0_i32_0 : i32, i32
  }
  func.func @transform_3(%arg0: i32) -> (i32, i32, i32) {
    %c0_i32 = arith.constant 0 : i32
    %c0_i32_0 = arith.constant 0 : i32
    %c0_i32_1 = arith.constant 0 : i32
    %c0_i32_2 = arith.constant 0 : i32
    return %c0_i32, %c0_i32_0, %c0_i32_1 : i32, i32, i32
  }
  func.func @transform_4(%arg0: i32) -> (i32, i32) {
    %c0_i32 = arith.constant 0 : i32
    %c0_i32_0 = arith.constant 0 : i32
    %c0_i32_1 = arith.constant 0 : i32
    return %c0_i32, %c0_i32_0 : i32, i32
  }
  func.func @transform_5(%arg0: i32) -> (i32, i32, i32) {
    %c0_i32 = arith.constant 0 : i32
    %c0_i32_0 = arith.constant 0 : i32
    %c0_i32_1 = arith.constant 0 : i32
    return %arg0, %c0_i32, %c0_i32_0 : i32, i32, i32
  }
}

</mosaic_0001>

<llo_original>
// kernel: tpu_custom_call.1
$region0: #{tpu_custom_call.1}
  #allocation0 [shape = 'u32[]', space=smem, size = 0x4, offset = 0x4, fixed_abs, tag = 'smem constant byte address 0x4 - core index']
  #allocation1 [shape = 'u32[144,128]{1,0:T(1,128)}', space=vmem, size = 0x12000, scoped, tag = 'internal scratch']
  #allocation2 [shape = 'f32[4,264]{1,0:T(4,128)}', space=vmem, size = 0x1800, scoped, tag = 'scratch operand']
  #allocation3 [shape = 'f32[4,264]{1,0:T(4,128)}', space=vmem, size = 0x1800, scoped, tag = 'scratch operand']
  %s0 = inlined_call_operand.hbm [shape: f32[8,4,128], index: 0, kind: input, shape index: {}]
  %s1 = inlined_call_operand.hbm [shape: f32[3,4,4], index: 1, kind: input, shape index: {}]
  %s2 = inlined_call_operand.vmem [shape: f32[4,1], index: 2, kind: input, shape index: {}]
  %s3 = inlined_call_operand.vmem [shape: f32[3,4,4], index: 3, kind: input, shape index: {}]
  %s4 = inlined_call_operand.vmem [shape: f32[4,1], index: 4, kind: input, shape index: {}]
  %s5 = inlined_call_operand.hbm [shape: f32[8,4,128], index: 5, kind: output, shape index: {}]
  %s6 = sld [smem:[#allocation0]]
  $region61: #{tpu_custom_call.1} parent=0
    _
  %s8 = ssub.s32 1, %s6
  %s9 = scalar_select 0, %s8, %s6
  $region1: #{tpu_custom_call.1} parent=0
    #allocation4 [shape = 'u8[8192]{0}', space=vmem, size = 0x2000, scoped, tag = 'input window, operand 0']
    #allocation5 [shape = 's32[2]{0}', space=sflag, size = 0x8, scoped, tag = 'scoped memory for tpu_custom_call.1']
    #allocation6 [shape = 's32[2]{0}', space=sflag, size = 0x8, scoped, tag = 'scoped memory for tpu_custom_call.1']
    #allocation7 [shape = 'u8[6144]{0}', space=vmem, size = 0x1800, scoped, tag = 'input window, operand 1, single buffered']
    #allocation8 [shape = 's32[1]{0}', space=sflag, size = 0x4, scoped, tag = 'scoped memory for tpu_custom_call.1']
    #allocation9 [shape = 'u8[8192]{0}', space=vmem, size = 0x2000, scoped, tag = 'output window, operand 0']
    %10 = vsyncpa [#allocation5], 0
    %s11 = scalar_lea.sflag [#allocation5], 1
    %12 = vsyncpa %s11, 0
    %13 = vsyncpa [#allocation8], 0
    %14 = vsyncpa [#allocation6], 0
    %s15 = scalar_lea.sflag [#allocation6], 1
    %16 = vsyncpa %s15, 0
    loop: start=0, step=1, limit=6
    $region2: #{tpu_custom_call.1} parent=1 // loop_pre_header
      _
    $region3: #{tpu_custom_call.1} parent=1 // loop_header
      %s18 = sphi 0, %s22
      %p19 = scmp.ge.s32.totalorder %s18, 6
      %s28 = sphi 0, %s30
      %s31 = sphi 0, %s28
      %s32 = sphi 0, %s31
      %s48 = sphi 0, %s32
      %s52 = sphi 0, %s52
      %s54 = sphi 0, %s52
      %s55 = sphi 0, %s54
      %s69 = sphi 0, %s55
      %s73 = sphi 0, %s73
      %s75 = sphi 0, %s73
      %s76 = sphi 0, %s75
      %s90 = sphi 0, %s76
      %s94 = sphi 0, %s94
      %s96 = sphi 0, %s94
      %s97 = sphi 0, %s96
      %s111 = sphi 0, %s97
      %s115 = sphi 0, %s115
      %s117 = sphi 0, %s115
      %s118 = sphi 0, %s117
      %s132 = sphi 0, %s118
      %s138 = sphi 0, %s140
      %s141 = sphi 0, %s138
      %s142 = sphi 0, %s141
      %s158 = sphi 0, %s142
    $region4: #{tpu_custom_call.1} parent=1 // loop_header_branch
      %21 = sbr.rel (%p19) target = $region8
    $region5: #{tpu_custom_call.1} parent=1 // loop_body
      %s23 = ssub.s32 %s18, 1
      %s24 = ssub.s32 %s18, 2
      %s25 = sadd.s32 %s18, 1
      %s26 = ssub.s32 %s18, %s25
      %p27 = scmp.eq.s32.totalorder %s26, 0
      %s29 = sadd.s32 %s28, 1
      %s30 = scalar_select %p27, %s28, %s29
      %p33 = pneg %p27
      %p34 = scmp.eq.s32.totalorder %s18, 3
      %p35 = por %p33, %p34
      %p36 = scmp.ne.s32.totalorder %s28, %s31
      %p37 = scmp.eq.s32.totalorder %s18, 0
      %p38 = por %p36, %p37
      %p39 = scmp.ne.s32.totalorder %s28, %s31
      %p40 = scmp.eq.s32.totalorder %s23, 3
      %p41 = por %p39, %p40
      %p42 = scmp.ne.s32.totalorder %s31, %s32
      %p43 = scmp.eq.s32.totalorder %s23, 0
      %p44 = por %p42, %p43
      %p45 = scmp.ne.s32.totalorder %s31, %s32
      %p46 = scmp.eq.s32.totalorder %s24, 3
      %p47 = por %p45, %p46
      %p49 = scmp.ne.s32.totalorder %s32, %s48
      %p50 = scmp.eq.s32.totalorder %s24, 0
      %p51 = por %p49, %p50
      %s53 = sadd.s32 %s52, 1
      %p56 = scmp.eq.s32.totalorder %s18, 3
      %p57 = scmp.ne.s32.totalorder %s52, %s54
      %p58 = scmp.eq.s32.totalorder %s18, 0
      %p59 = por %p57, %p58
      %p60 = scmp.ne.s32.totalorder %s52, %s54
      %p61 = scmp.eq.s32.totalorder %s23, 3
      %p62 = por %p60, %p61
      %p63 = scmp.ne.s32.totalorder %s54, %s55
      %p64 = scmp.eq.s32.totalorder %s23, 0
      %p65 = por %p63, %p64
      %p66 = scmp.ne.s32.totalorder %s54, %s55
      %p67 = scmp.eq.s32.totalorder %s24, 3
      %p68 = por %p66, %p67
      %p70 = scmp.ne.s32.totalorder %s55, %s69
      %p71 = scmp.eq.s32.totalorder %s24, 0
      %p72 = por %p70, %p71
      %s74 = sadd.s32 %s73, 1
      %p77 = scmp.eq.s32.totalorder %s18, 3
      %p78 = scmp.ne.s32.totalorder %s73, %s75
      %p79 = scmp.eq.s32.totalorder %s18, 0
      %p80 = por %p78, %p79
      %p81 = scmp.ne.s32.totalorder %s73, %s75
      %p82 = scmp.eq.s32.totalorder %s23, 3
      %p83 = por %p81, %p82
      %p84 = scmp.ne.s32.totalorder %s75, %s76
      %p85 = scmp.eq.s32.totalorder %s23, 0
      %p86 = por %p84, %p85
      %p87 = scmp.ne.s32.totalorder %s75, %s76
      %p88 = scmp.eq.s32.totalorder %s24, 3
      %p89 = por %p87, %p88
      %p91 = scmp.ne.s32.totalorder %s76, %s90
      %p92 = scmp.eq.s32.totalorder %s24, 0
      %p93 = por %p91, %p92
      %s95 = sadd.s32 %s94, 1
      %p98 = scmp.eq.s32.totalorder %s18, 3
      %p99 = scmp.ne.s32.totalorder %s94, %s96
      %p100 = scmp.eq.s32.totalorder %s18, 0
      %p101 = por %p99, %p100
      %p102 = scmp.ne.s32.totalorder %s94, %s96
      %p103 = scmp.eq.s32.totalorder %s23, 3
      %p104 = por %p102, %p103
      %p105 = scmp.ne.s32.totalorder %s96, %s97
      %p106 = scmp.eq.s32.totalorder %s23, 0
      %p107 = por %p105, %p106
      %p108 = scmp.ne.s32.totalorder %s96, %s97
      %p109 = scmp.eq.s32.totalorder %s24, 3
      %p110 = por %p108, %p109
      %p112 = scmp.ne.s32.totalorder %s97, %s111
      %p113 = scmp.eq.s32.totalorder %s24, 0
      %p114 = por %p112, %p113
      %s116 = sadd.s32 %s115, 1
      %p119 = scmp.eq.s32.totalorder %s18, 3
      %p120 = scmp.ne.s32.totalorder %s115, %s117
      %p121 = scmp.eq.s32.totalorder %s18, 0
      %p122 = por %p120, %p121
      %p123 = scmp.ne.s32.totalorder %s115, %s117
      %p124 = scmp.eq.s32.totalorder %s23, 3
      %p125 = por %p123, %p124
      %p126 = scmp.ne.s32.totalorder %s117, %s118
      %p127 = scmp.eq.s32.totalorder %s23, 0
      %p128 = por %p126, %p127
      %p129 = scmp.ne.s32.totalorder %s117, %s118
      %p130 = scmp.eq.s32.totalorder %s24, 3
      %p131 = por %p129, %p130
      %p133 = scmp.ne.s32.totalorder %s118, %s132
      %p134 = scmp.eq.s32.totalorder %s24, 0
      %p135 = por %p133, %p134
      %s136 = ssub.s32 %s18, %s25
      %p137 = scmp.eq.s32.totalorder %s136, 0
      %s139 = sadd.s32 %s138, 1
      %s140 = scalar_select %p137, %s138, %s139
      %p143 = pneg %p137
      %p144 = scmp.eq.s32.totalorder %s18, 3
      %p145 = por %p143, %p144
      %p146 = scmp.ne.s32.totalorder %s138, %s141
      %p147 = scmp.eq.s32.totalorder %s18, 0
      %p148 = por %p146, %p147
      %p149 = scmp.ne.s32.totalorder %s138, %s141
      %p150 = scmp.eq.s32.totalorder %s23, 3
      %p151 = por %p149, %p150
      %p152 = scmp.ne.s32.totalorder %s141, %s142
      %p153 = scmp.eq.s32.totalorder %s23, 0
      %p154 = por %p152, %p153
      %p155 = scmp.ne.s32.totalorder %s141, %s142
      %p156 = scmp.eq.s32.totalorder %s24, 3
      %p157 = por %p155, %p156
      %p159 = scmp.ne.s32.totalorder %s142, %s158
      %p160 = scmp.eq.s32.totalorder %s24, 0
      %p161 = por %p159, %p160
      %p162 = scmp.le.s32.totalorder 1, %s18
      %p163 = scmp.lt.s32.totalorder %s18, 5
      %p164 = pnand %p162, %p163
      %p165 = pneg %p164
      // Predicated region
      $region9: #{tpu_custom_call.1} parent=5 // pred_check
        _
      $region10: #{tpu_custom_call.1} parent=5 // pred_check_branch
        %167 = sbr.rel (%p164) target = $region12
      $region11: #{tpu_custom_call.1} parent=5 // pred_region
        %s168 = ssub.s32 %s18, 1
        // Predicated region
        $region13: #{tpu_custom_call.1} parent=11 // pred_check
          %p169 = pneg %p65
        $region14: #{tpu_custom_call.1} parent=11 // pred_check_branch
          %171 = sbr.rel (%p169) target = $region16
        $region15: #{tpu_custom_call.1} parent=11 // pred_region
          %s173 = ssub.s32 192, 192
          %174 = vsyncadd [#allocation8], %s173
          %s175 = sshll.u32 [#allocation7], 4
          %s176 = int_to_ptr.vmem [resolvable:$true] %s175
          %181 = dma.hbm_to_vmem [thread:$0]  %s1, 192, %s176, [#allocation8], 64, 64, 4
        $region16: #{tpu_custom_call.1} parent=11 // pred_fallthru
          _
        // Predicated region
        $region17: #{tpu_custom_call.1} parent=11 // pred_check
          %p182 = pneg %p86
        $region18: #{tpu_custom_call.1} parent=11 // pred_check_branch
          %184 = sbr.rel (%p182) target = $region20
        $region19: #{tpu_custom_call.1} parent=11 // pred_region
          _
        $region20: #{tpu_custom_call.1} parent=11 // pred_fallthru
          _
        // Predicated region
        $region21: #{tpu_custom_call.1} parent=11 // pred_check
          %p185 = pneg %p107
        $region22: #{tpu_custom_call.1} parent=11 // pred_check_branch
          %187 = sbr.rel (%p185) target = $region24
        $region23: #{tpu_custom_call.1} parent=11 // pred_region
          _
        $region24: #{tpu_custom_call.1} parent=11 // pred_fallthru
          _
        // Predicated region
        $region25: #{tpu_custom_call.1} parent=11 // pred_check
          %p188 = pneg %p128
        $region26: #{tpu_custom_call.1} parent=11 // pred_check_branch
          %190 = sbr.rel (%p188) target = $region28
        $region27: #{tpu_custom_call.1} parent=11 // pred_region
          _
        $region28: #{tpu_custom_call.1} parent=11 // pred_fallthru
          _
      $region12: #{tpu_custom_call.1} parent=5 // pred_fallthru
        _
      %p191 = scmp.lt.s32.totalorder %s18, 4
      // Predicated region
      $region29: #{tpu_custom_call.1} parent=5 // pred_check
        %p192 = pneg %p191
      $region30: #{tpu_custom_call.1} parent=5 // pred_check_branch
        %194 = sbr.rel (%p192) target = $region32
      $region31: #{tpu_custom_call.1} parent=5 // pred_region
        // Predicated region
        $region33: #{tpu_custom_call.1} parent=31 // pred_check
          %p195 = pneg %p38
        $region34: #{tpu_custom_call.1} parent=31 // pred_check_branch
          %197 = sbr.rel (%p195) target = $region36
        $region35: #{tpu_custom_call.1} parent=31 // pred_region
          %s198 = sand.u32 %s28, 1
          %s199 = scalar_lea.sflag [#allocation5], %s198
          %s200 = sand.u32 %s28, 1
          %s201 = smul.addr %s200, 8
          %s202 = scalar_lea.vmem [#allocation4], %s201
          %s203 = smul.u32 2, %s18
          %s205 = ssub.s32 128, 128
          %206 = vsyncadd %s199, %s205
          %s207 = smul.addr %s203, 64
          %s208 = scalar_lea.hbm %s0, %s207
          %s209 = sshll.u32 %s202, 4
          %s210 = int_to_ptr.vmem [resolvable:$true] %s209
          %215 = dma.hbm_to_vmem [thread:$0]  %s208, 128, %s210, %s199, 64, 64, 4
        $region36: #{tpu_custom_call.1} parent=31 // pred_fallthru
          _
      $region32: #{tpu_custom_call.1} parent=5 // pred_fallthru
        _
      %p216 = scmp.le.s32.totalorder 1, %s18
      %p217 = scmp.lt.s32.totalorder %s18, 5
      %p218 = pnand %p216, %p217
      %p219 = pneg %p218
      // Predicated region
      $region37: #{tpu_custom_call.1} parent=5 // pred_check
        _
      $region38: #{tpu_custom_call.1} parent=5 // pred_check_branch
        %221 = sbr.rel (%p218) target = $region40
      $region39: #{tpu_custom_call.1} parent=5 // pred_region
        %s222 = ssub.s32 %s18, 1
        %s223 = sand.u32 %s31, 1
        %s224 = scalar_lea.sflag [#allocation5], %s223
        %s225 = sand.u32 %s31, 1
        %s226 = smul.addr %s225, 8
        %s227 = scalar_lea.vmem [#allocation4], %s226
        // Predicated region
        $region41: #{tpu_custom_call.1} parent=39 // pred_check
          %p228 = pneg %p44
        $region42: #{tpu_custom_call.1} parent=39 // pred_check_branch
          %230 = sbr.rel (%p228) target = $region44
        $region43: #{tpu_custom_call.1} parent=39 // pred_region
          %231 = dma.done %s224, 128
        $region44: #{tpu_custom_call.1} parent=39 // pred_fallthru
          _
        // Predicated region
        $region45: #{tpu_custom_call.1} parent=39 // pred_check
          %p232 = pneg %p65
        $region46: #{tpu_custom_call.1} parent=39 // pred_check_branch
          %234 = sbr.rel (%p232) target = $region48
        $region47: #{tpu_custom_call.1} parent=39 // pred_region
          %235 = dma.done [#allocation8], 192
        $region48: #{tpu_custom_call.1} parent=39 // pred_fallthru
          _
        %s236 = sand.u32 %s31, 1
        %s237 = scalar_lea.sflag [#allocation5], %s236
        %s238 = sand.u32 %s31, 1
        %s239 = smul.addr %s238, 8
        %s240 = scalar_lea.vmem [#allocation4], %s239
        %p241 = pneg %p44
        %p242 = pneg %p41
        %p243 = pneg %p65
        %p244 = pneg %p62
        %p245 = pneg %p86
        %p246 = pneg %p83
        %p247 = pneg %p107
        %p248 = pneg %p104
        %p249 = pneg %p128
        %p250 = pneg %p125
        %p251 = pneg %p154
        %p252 = pneg %p151
        %s253 = sand.u32 %s141, 1
        %s254 = scalar_lea.sflag [#allocation6], %s253
        %s255 = sand.u32 %s141, 1
        %s256 = smul.addr %s255, 8
        %s257 = scalar_lea.vmem [#allocation9], %s256
        %s258 = smul.u32 2, %s23
        %s259 = smul.u32 2, %s23
        %v260 = vld [vmem:[%s227] sm:$0xf]
        %262 = vrot.lane.b32.xlu0 %v260, 2
        %v263 = vpop.permute.xlu0 %262
        %v264 = vrot.slane %v263, 4
        %vm265 = vcmask 15360
        %v266 = vsel %vm265, %v264, %v263
        %vm268 = vcmask 1043472
        %vm269 = vcmask 15364
        %vm270 = vmor %vm269, %vm268
        %271 = vst.msk [vmem:[#allocation2] sm:$0xff] %vm270, %v266
        %s272 = scalar_lea.vmem %s227, 4 [#allocation4]
        %v273 = vld [vmem:[%s272] sm:$0xf]
        %275 = vrot.lane.b32.xlu0 %v273, 6
        %v276 = vpop.permute.xlu0 %275
        %v277 = vrot.slane %v276, 4
        %vm278 = vcmask 48128
        %v279 = vsel %vm278, %v277, %v276
        %vm281 = vcmask 1043504
        %vm282 = vcmask 48132
        %vm283 = vmor %vm282, %vm281
        %284 = vst.msk [vmem:[#allocation2 + $0x4] sm:$0xff] %vm283, %v279
        %vm285 = vcmask 11264
        %286 = vst.msk [vmem:[#allocation2] sm:$0xf] %vm285, 0.0
        %vm287 = vcmask 27664
        %288 = vst.msk [vmem:[#allocation2 + $0x4] sm:$0xf] %vm287, 0.0
        %vm289 = vcmask 44064
        %290 = vst.msk [vmem:[#allocation2 + $0x4] sm:$0xf] %vm289, 0.0
        %vm291 = vcmask 60464
        %292 = vst.msk [vmem:[#allocation2 + $0x8] sm:$0xf] %vm291, 0.0
        %293 = vst.msk [vmem:[#allocation3] sm:$0xf] %vm285, 0.0
        %294 = vst.msk [vmem:[#allocation3 + $0x8] sm:$0xf] %vm291, 0.0
        %v295 = vld [vmem:[#allocation7] sm:$0xf]
        %v296 = vld [vmem:[#allocation2] sm:$0xff]
        %v297 = vld [vmem:[#allocation2 + $0x8] sm:$0xf]
        %s298 = scalar_lea.vmem [#allocation7], 4
        %v299 = vld [vmem:[%s298] sm:$0xf]
        %v302 = vcombine.high %v296, %v296
        %303 = vrot.lane.b32.xlu0 %v296, 126
        %v304 = vpop.permute.xlu0 %303
        %305 = vrot.lane.b32.xlu0 %v302, 126
        %v306 = vpop.permute.xlu0 %305
        %307 = vrot.lane.b32.xlu0 %v297, 126
        %v308 = vpop.permute.xlu0 %307
        %vm309 = vcmask 1031168
        %v310 = vsel %vm309, %v304, %v306
        %v311 = vsel %vm309, %v306, %v308
        %vm312 = vcmask 31744
        %v314 = vsel %vm312, %v299, 0
        %vm316 = vcmask 1043456
        %v317 = vsel %vm316, %v310, 0
        %v319 = vsel %vm316, %v311, 0
        %v321 = vsel %vm316, %v308, 0
        %323 = vmatprep.subr.mxu0 0.0
        %324 = vmatpush1.msra.mxu0 0.0
        %325 = vmatprep.subr.mxu0 0.0
        %326 = vmatpush1.msra.mxu0 0.0
        %327 = vmatprep.subr.mxu0 0.0
        %328 = vmatpush1.msra.mxu0 0.0
        %329 = vmatprep.subr.mxu0 0.0
        %330 = vmatpush1.msra.mxu0 0.0
        %331 = vmatprep.subr.mxu0 0.0
        %332 = vmatpush1.msra.mxu0 0.0
        %333 = vmatprep.subr.mxu0 0.0
        %334 = vmatpush1.msra.mxu0 0.0
        %335 = vmatprep.subr.mxu0 0.0
        %336 = vmatpush1.msra.mxu0 0.0
        %337 = vmatprep.subr.mxu0 0.0
        %338 = vmatpush1.msra.mxu0 0.0
        %339 = vmatprep.subr.mxu0 0.0
        %340 = vmatpush1.msra.mxu0 0.0
        %341 = vmatprep.subr.mxu0 0.0
        %342 = vmatpush1.msra.mxu0 0.0
        %343 = vmatprep.subr.mxu0 0.0
        %344 = vmatpush1.msra.mxu0 0.0
        %345 = vmatprep.subr.mxu0 0.0
        %346 = vmatpush1.msra.mxu0 0.0
        %347 = vmatprep.subr.mxu0 0.0
        %348 = vmatpush1.msra.mxu0 0.0
        %349 = vmatprep.subr.mxu0 0.0
        %350 = vmatpush1.msra.mxu0 0.0
        %351 = vmatprep.subr.mxu0 0.0
        %352 = vmatpush1.msra.mxu0 0.0
        %353 = vmatprep.subr.mxu0 %v319
        %354 = vmatpush1.msra.mxu0 %v317
        %355 = vmatprep.subr.mxu0 0.0
        %356 = vmatpush2.msra.mxu0 0.0
        %357 = vmatprep.subr.mxu0 0.0
        %358 = vmatpush2.msra.mxu0 0.0
        %359 = vmatprep.subr.mxu0 0.0
        %360 = vmatpush2.msra.mxu0 0.0
        %361 = vmatprep.subr.mxu0 0.0
        %362 = vmatpush2.msra.mxu0 0.0
        %363 = vmatprep.subr.mxu0 0.0
        %364 = vmatpush2.msra.mxu0 0.0
        %365 = vmatprep.subr.mxu0 0.0
        %366 = vmatpush2.msra.mxu0 0.0
        %367 = vmatprep.subr.mxu0 0.0
        %368 = vmatpush2.msra.mxu0 0.0
        %369 = vmatprep.subr.mxu0 0.0
        %370 = vmatpush2.msra.mxu0 0.0
        %371 = vmatprep.subr.mxu0 0.0
        %372 = vmatpush2.msra.mxu0 0.0
        %373 = vmatprep.subr.mxu0 0.0
        %374 = vmatpush2.msra.mxu0 0.0
        %375 = vmatprep.subr.mxu0 0.0
        %376 = vmatpush2.msra.mxu0 0.0
        %377 = vmatprep.subr.mxu0 0.0
        %378 = vmatpush2.msra.mxu0 0.0
        %379 = vmatprep.subr.mxu0 0.0
        %380 = vmatpush2.msra.mxu0 0.0
        %381 = vmatprep.subr.mxu0 0.0
        %382 = vmatpush2.msra.mxu0 0.0
        %383 = vmatprep.subr.mxu0 0.0
        %384 = vmatpush2.msra.mxu0 0.0
        %385 = vmatprep.subr.mxu0 0.0
        %386 = vmatpush2.msra.mxu0 0.0
        %387 = vmatprep.mubr.f32.mxu0 0.0
        %388 = vmatmul.mubr.f32.gmra.mxu0 %v314
        %v389 = vpop.f32.mrf.mxu0
        %v390 = vadd.f32 0.0, %v389
        %v391 = vpop.f32.mrf.mxu0
        %v392 = vadd.f32 0.0, %v391
        %393 = vdwg.mxu0
        %394 = vmatprep.subr.mxu0 0.0
        %395 = vmatpush1.msra.mxu0 0.0
        %396 = vmatprep.subr.mxu0 0.0
        %397 = vmatpush1.msra.mxu0 0.0
        %398 = vmatprep.subr.mxu0 0.0
        %399 = vmatpush1.msra.mxu0 0.0
        %400 = vmatprep.subr.mxu0 0.0
        %401 = vmatpush1.msra.mxu0 0.0
        %402 = vmatprep.subr.mxu0 0.0
        %403 = vmatpush1.msra.mxu0 0.0
        %404 = vmatprep.subr.mxu0 0.0
        %405 = vmatpush1.msra.mxu0 0.0
        %406 = vmatprep.subr.mxu0 0.0
        %407 = vmatpush1.msra.mxu0 0.0
        %408 = vmatprep.subr.mxu0 0.0
        %409 = vmatpush1.msra.mxu0 0.0
        %410 = vmatprep.subr.mxu0 0.0
        %411 = vmatpush1.msra.mxu0 0.0
        %412 = vmatprep.subr.mxu0 0.0
        %413 = vmatpush1.msra.mxu0 0.0
        %414 = vmatprep.subr.mxu0 0.0
        %415 = vmatpush1.msra.mxu0 0.0
        %416 = vmatprep.subr.mxu0 0.0
        %417 = vmatpush1.msra.mxu0 0.0
        %418 = vmatprep.subr.mxu0 0.0
        %419 = vmatpush1.msra.mxu0 0.0
        %420 = vmatprep.subr.mxu0 0.0
        %421 = vmatpush1.msra.mxu0 0.0
        %422 = vmatprep.subr.mxu0 0.0
        %423 = vmatpush1.msra.mxu0 0.0
        %424 = vmatprep.subr.mxu0 0.0
        %425 = vmatpush1.msra.mxu0 %v321
        %426 = vmatprep.subr.mxu0 0.0
        %427 = vmatpush2.msra.mxu0 0.0
        %428 = vmatprep.subr.mxu0 0.0
        %429 = vmatpush2.msra.mxu0 0.0
        %430 = vmatprep.subr.mxu0 0.0
        %431 = vmatpush2.msra.mxu0 0.0
        %432 = vmatprep.subr.mxu0 0.0
        %433 = vmatpush2.msra.mxu0 0.0
        %434 = vmatprep.subr.mxu0 0.0
        %435 = vmatpush2.msra.mxu0 0.0
        %436 = vmatprep.subr.mxu0 0.0
        %437 = vmatpush2.msra.mxu0 0.0
        %438 = vmatprep.subr.mxu0 0.0
        %439 = vmatpush2.msra.mxu0 0.0
        %440 = vmatprep.subr.mxu0 0.0
        %441 = vmatpush2.msra.mxu0 0.0
        %442 = vmatprep.subr.mxu0 0.0
        %443 = vmatpush2.msra.mxu0 0.0
        %444 = vmatprep.subr.mxu0 0.0
        %445 = vmatpush2.msra.mxu0 0.0
        %446 = vmatprep.subr.mxu0 0.0
        %447 = vmatpush2.msra.mxu0 0.0
        %448 = vmatprep.subr.mxu0 0.0
        %449 = vmatpush2.msra.mxu0 0.0
        %450 = vmatprep.subr.mxu0 0.0
        %451 = vmatpush2.msra.mxu0 0.0
        %452 = vmatprep.subr.mxu0 0.0
        %453 = vmatpush2.msra.mxu0 0.0
        %454 = vmatprep.subr.mxu0 0.0
        %455 = vmatpush2.msra.mxu0 0.0
        %456 = vmatprep.subr.mxu0 0.0
        %457 = vmatpush2.msra.mxu0 0.0
        %458 = vmatprep.mubr.f32.mxu0 0.0
        %459 = vmatmul.mubr.f32.gmra.mxu0 %v314
        %v460 = vpop.f32.mrf.mxu0
        %v461 = vadd.f32 0.0, %v460
        %v462 = vpop.f32.mrf.mxu0
        %463 = vdwg.mxu0
        %v465 = vsel %vm312, %v295, 0
        %v467 = vsel %vm316, %v296, 0
        %v469 = vsel %vm316, %v302, 0
        %v471 = vsel %vm316, %v297, 0
        %473 = vmatprep.subr.mxu0 0.0
        %474 = vmatpush1.msra.mxu0 0.0
        %475 = vmatprep.subr.mxu0 0.0
        %476 = vmatpush1.msra.mxu0 0.0
        %477 = vmatprep.subr.mxu0 0.0
        %478 = vmatpush1.msra.mxu0 0.0
        %479 = vmatprep.subr.mxu0 0.0
        %480 = vmatpush1.msra.mxu0 0.0
        %481 = vmatprep.subr.mxu0 0.0
        %482 = vmatpush1.msra.mxu0 0.0
        %483 = vmatprep.subr.mxu0 0.0
        %484 = vmatpush1.msra.mxu0 0.0
        %485 = vmatprep.subr.mxu0 0.0
        %486 = vmatpush1.msra.mxu0 0.0
        %487 = vmatprep.subr.mxu0 0.0
        %488 = vmatpush1.msra.mxu0 0.0
        %489 = vmatprep.subr.mxu0 0.0
        %490 = vmatpush1.msra.mxu0 0.0
        %491 = vmatprep.subr.mxu0 0.0
        %492 = vmatpush1.msra.mxu0 0.0
        %493 = vmatprep.subr.mxu0 0.0
        %494 = vmatpush1.msra.mxu0 0.0
        %495 = vmatprep.subr.mxu0 0.0
        %496 = vmatpush1.msra.mxu0 0.0
        %497 = vmatprep.subr.mxu0 0.0
        %498 = vmatpush1.msra.mxu0 0.0
        %499 = vmatprep.subr.mxu0 0.0
        %500 = vmatpush1.msra.mxu0 0.0
        %501 = vmatprep.subr.mxu0 0.0
        %502 = vmatpush1.msra.mxu0 0.0
        %503 = vmatprep.subr.mxu0 %v469
        %504 = vmatpush1.msra.mxu0 %v467
        %505 = vmatprep.subr.mxu0 0.0
        %506 = vmatpush2.msra.mxu0 0.0
        %507 = vmatprep.subr.mxu0 0.0
        %508 = vmatpush2.msra.mxu0 0.0
        %509 = vmatprep.subr.mxu0 0.0
        %510 = vmatpush2.msra.mxu0 0.0
        %511 = vmatprep.subr.mxu0 0.0
        %512 = vmatpush2.msra.mxu0 0.0
        %513 = vmatprep.subr.mxu0 0.0
        %514 = vmatpush2.msra.mxu0 0.0
        %515 = vmatprep.subr.mxu0 0.0
        %516 = vmatpush2.msra.mxu0 0.0
        %517 = vmatprep.subr.mxu0 0.0
        %518 = vmatpush2.msra.mxu0 0.0
        %519 = vmatprep.subr.mxu0 0.0
        %520 = vmatpush2.msra.mxu0 0.0
        %521 = vmatprep.subr.mxu0 0.0
        %522 = vmatpush2.msra.mxu0 0.0
        %523 = vmatprep.subr.mxu0 0.0
        %524 = vmatpush2.msra.mxu0 0.0
        %525 = vmatprep.subr.mxu0 0.0
        %526 = vmatpush2.msra.mxu0 0.0
        %527 = vmatprep.subr.mxu0 0.0
        %528 = vmatpush2.msra.mxu0 0.0
        %529 = vmatprep.subr.mxu0 0.0
        %530 = vmatpush2.msra.mxu0 0.0
        %531 = vmatprep.subr.mxu0 0.0
        %532 = vmatpush2.msra.mxu0 0.0
        %533 = vmatprep.subr.mxu0 0.0
        %534 = vmatpush2.msra.mxu0 0.0
        %535 = vmatprep.subr.mxu0 0.0
        %536 = vmatpush2.msra.mxu0 0.0
        %537 = vmatprep.mubr.f32.mxu0 0.0
        %538 = vmatmul.mubr.f32.gmra.mxu0 %v465
        %v539 = vpop.f32.mrf.mxu0
        %v540 = vadd.f32 %v390, %v539
        %v541 = vpop.f32.mrf.mxu0
        %v542 = vadd.f32 %v392, %v541
        %543 = vdwg.mxu0
        %544 = vmatprep.subr.mxu0 0.0
        %545 = vmatpush1.msra.mxu0 0.0
        %546 = vmatprep.subr.mxu0 0.0
        %547 = vmatpush1.msra.mxu0 0.0
        %548 = vmatprep.subr.mxu0 0.0
        %549 = vmatpush1.msra.mxu0 0.0
        %550 = vmatprep.subr.mxu0 0.0
        %551 = vmatpush1.msra.mxu0 0.0
        %552 = vmatprep.subr.mxu0 0.0
        %553 = vmatpush1.msra.mxu0 0.0
        %554 = vmatprep.subr.mxu0 0.0
        %555 = vmatpush1.msra.mxu0 0.0
        %556 = vmatprep.subr.mxu0 0.0
        %557 = vmatpush1.msra.mxu0 0.0
        %558 = vmatprep.subr.mxu0 0.0
        %559 = vmatpush1.msra.mxu0 0.0
        %560 = vmatprep.subr.mxu0 0.0
        %561 = vmatpush1.msra.mxu0 0.0
        %562 = vmatprep.subr.mxu0 0.0
        %563 = vmatpush1.msra.mxu0 0.0
        %564 = vmatprep.subr.mxu0 0.0
        %565 = vmatpush1.msra.mxu0 0.0
        %566 = vmatprep.subr.mxu0 0.0
        %567 = vmatpush1.msra.mxu0 0.0
        %568 = vmatprep.subr.mxu0 0.0
        %569 = vmatpush1.msra.mxu0 0.0
        %570 = vmatprep.subr.mxu0 0.0
        %571 = vmatpush1.msra.mxu0 0.0
        %572 = vmatprep.subr.mxu0 0.0
        %573 = vmatpush1.msra.mxu0 0.0
        %574 = vmatprep.subr.mxu0 0.0
        %575 = vmatpush1.msra.mxu0 %v471
        %576 = vmatprep.subr.mxu0 0.0
        %577 = vmatpush2.msra.mxu0 0.0
        %578 = vmatprep.subr.mxu0 0.0
        %579 = vmatpush2.msra.mxu0 0.0
        %580 = vmatprep.subr.mxu0 0.0
        %581 = vmatpush2.msra.mxu0 0.0
        %582 = vmatprep.subr.mxu0 0.0
        %583 = vmatpush2.msra.mxu0 0.0
        %584 = vmatprep.subr.mxu0 0.0
        %585 = vmatpush2.msra.mxu0 0.0
        %586 = vmatprep.subr.mxu0 0.0
        %587 = vmatpush2.msra.mxu0 0.0
        %588 = vmatprep.subr.mxu0 0.0
        %589 = vmatpush2.msra.mxu0 0.0
        %590 = vmatprep.subr.mxu0 0.0
        %591 = vmatpush2.msra.mxu0 0.0
        %592 = vmatprep.subr.mxu0 0.0
        %593 = vmatpush2.msra.mxu0 0.0
        %594 = vmatprep.subr.mxu0 0.0
        %595 = vmatpush2.msra.mxu0 0.0
        %596 = vmatprep.subr.mxu0 0.0
        %597 = vmatpush2.msra.mxu0 0.0
        %598 = vmatprep.subr.mxu0 0.0
        %599 = vmatpush2.msra.mxu0 0.0
        %600 = vmatprep.subr.mxu0 0.0
        %601 = vmatpush2.msra.mxu0 0.0
        %602 = vmatprep.subr.mxu0 0.0
        %603 = vmatpush2.msra.mxu0 0.0
        %604 = vmatprep.subr.mxu0 0.0
        %605 = vmatpush2.msra.mxu0 0.0
        %606 = vmatprep.subr.mxu0 0.0
        %607 = vmatpush2.msra.mxu0 0.0
        %608 = vmatprep.mubr.f32.mxu0 0.0
        %609 = vmatmul.mubr.f32.gmra.mxu0 %v465
        %v610 = vpop.f32.mrf.mxu0
        %v611 = vadd.f32 %v461, %v610
        %v612 = vpop.f32.mrf.mxu0
        %613 = vdwg.mxu0
        %s614 = scalar_lea.vmem [#allocation7], 8
        %v615 = vld [vmem:[%s614] sm:$0xf]
        %v616 = vld [vmem:[#allocation2] sm:$0xff]
        %v617 = vld [vmem:[#allocation2 + $0x8] sm:$0xf]
        %v620 = vcombine.high %v616, %v616
        %621 = vrot.lane.b32.xlu0 %v616, 124
        %v622 = vpop.permute.xlu0 %621
        %623 = vrot.lane.b32.xlu0 %v620, 124
        %v624 = vpop.permute.xlu0 %623
        %625 = vrot.lane.b32.xlu0 %v617, 124
        %v626 = vpop.permute.xlu0 %625
        %vm627 = vcmask 1014784
        %v628 = vsel %vm627, %v622, %v624
        %v629 = vsel %vm627, %v624, %v626
        %v631 = vsel %vm312, %v615, 0
        %v633 = vsel %vm316, %v628, 0
        %v635 = vsel %vm316, %v629, 0
        %v637 = vsel %vm316, %v626, 0
        %639 = vmatprep.subr.mxu0 0.0
        %640 = vmatpush1.msra.mxu0 0.0
        %641 = vmatprep.subr.mxu0 0.0
        %642 = vmatpush1.msra.mxu0 0.0
        %643 = vmatprep.subr.mxu0 0.0
        %644 = vmatpush1.msra.mxu0 0.0
        %645 = vmatprep.subr.mxu0 0.0
        %646 = vmatpush1.msra.mxu0 0.0
        %647 = vmatprep.subr.mxu0 0.0
        %648 = vmatpush1.msra.mxu0 0.0
        %649 = vmatprep.subr.mxu0 0.0
        %650 = vmatpush1.msra.mxu0 0.0
        %651 = vmatprep.subr.mxu0 0.0
        %652 = vmatpush1.msra.mxu0 0.0
        %653 = vmatprep.subr.mxu0 0.0
        %654 = vmatpush1.msra.mxu0 0.0
        %655 = vmatprep.subr.mxu0 0.0
        %656 = vmatpush1.msra.mxu0 0.0
        %657 = vmatprep.subr.mxu0 0.0
        %658 = vmatpush1.msra.mxu0 0.0
        %659 = vmatprep.subr.mxu0 0.0
        %660 = vmatpush1.msra.mxu0 0.0
        %661 = vmatprep.subr.mxu0 0.0
        %662 = vmatpush1.msra.mxu0 0.0
        %663 = vmatprep.subr.mxu0 0.0
        %664 = vmatpush1.msra.mxu0 0.0
        %665 = vmatprep.subr.mxu0 0.0
        %666 = vmatpush1.msra.mxu0 0.0
        %667 = vmatprep.subr.mxu0 0.0
        %668 = vmatpush1.msra.mxu0 0.0
        %669 = vmatprep.subr.mxu0 %v635
        %670 = vmatpush1.msra.mxu0 %v633
        %671 = vmatprep.subr.mxu0 0.0
        %672 = vmatpush2.msra.mxu0 0.0
        %673 = vmatprep.subr.mxu0 0.0
        %674 = vmatpush2.msra.mxu0 0.0
        %675 = vmatprep.subr.mxu0 0.0
        %676 = vmatpush2.msra.mxu0 0.0
        %677 = vmatprep.subr.mxu0 0.0
        %678 = vmatpush2.msra.mxu0 0.0
        %679 = vmatprep.subr.mxu0 0.0
        %680 = vmatpush2.msra.mxu0 0.0
        %681 = vmatprep.subr.mxu0 0.0
        %682 = vmatpush2.msra.mxu0 0.0
        %683 = vmatprep.subr.mxu0 0.0
        %684 = vmatpush2.msra.mxu0 0.0
        %685 = vmatprep.subr.mxu0 0.0
        %686 = vmatpush2.msra.mxu0 0.0
        %687 = vmatprep.subr.mxu0 0.0
        %688 = vmatpush2.msra.mxu0 0.0
        %689 = vmatprep.subr.mxu0 0.0
        %690 = vmatpush2.msra.mxu0 0.0
        %691 = vmatprep.subr.mxu0 0.0
        %692 = vmatpush2.msra.mxu0 0.0
        %693 = vmatprep.subr.mxu0 0.0
        %694 = vmatpush2.msra.mxu0 0.0
        %695 = vmatprep.subr.mxu0 0.0
        %696 = vmatpush2.msra.mxu0 0.0
        %697 = vmatprep.subr.mxu0 0.0
        %698 = vmatpush2.msra.mxu0 0.0
        %699 = vmatprep.subr.mxu0 0.0
        %700 = vmatpush2.msra.mxu0 0.0
        %701 = vmatprep.subr.mxu0 0.0
        %702 = vmatpush2.msra.mxu0 0.0
        %703 = vmatprep.mubr.f32.mxu0 0.0
        %704 = vmatmul.mubr.f32.gmra.mxu0 %v631
        %v705 = vpop.f32.mrf.mxu0
        %v706 = vadd.f32 0.0, %v705
        %v707 = vpop.f32.mrf.mxu0
        %v708 = vadd.f32 0.0, %v707
        %709 = vdwg.mxu0
        %710 = vmatprep.subr.mxu0 0.0
        %711 = vmatpush1.msra.mxu0 0.0
        %712 = vmatprep.subr.mxu0 0.0
        %713 = vmatpush1.msra.mxu0 0.0
        %714 = vmatprep.subr.mxu0 0.0
        %715 = vmatpush1.msra.mxu0 0.0
        %716 = vmatprep.subr.mxu0 0.0
        %717 = vmatpush1.msra.mxu0 0.0
        %718 = vmatprep.subr.mxu0 0.0
        %719 = vmatpush1.msra.mxu0 0.0
        %720 = vmatprep.subr.mxu0 0.0
        %721 = vmatpush1.msra.mxu0 0.0
        %722 = vmatprep.subr.mxu0 0.0
        %723 = vmatpush1.msra.mxu0 0.0
        %724 = vmatprep.subr.mxu0 0.0
        %725 = vmatpush1.msra.mxu0 0.0
        %726 = vmatprep.subr.mxu0 0.0
        %727 = vmatpush1.msra.mxu0 0.0
        %728 = vmatprep.subr.mxu0 0.0
        %729 = vmatpush1.msra.mxu0 0.0
        %730 = vmatprep.subr.mxu0 0.0
        %731 = vmatpush1.msra.mxu0 0.0
        %732 = vmatprep.subr.mxu0 0.0
        %733 = vmatpush1.msra.mxu0 0.0
        %734 = vmatprep.subr.mxu0 0.0
        %735 = vmatpush1.msra.mxu0 0.0
        %736 = vmatprep.subr.mxu0 0.0
        %737 = vmatpush1.msra.mxu0 0.0
        %738 = vmatprep.subr.mxu0 0.0
        %739 = vmatpush1.msra.mxu0 0.0
        %740 = vmatprep.subr.mxu0 0.0
        %741 = vmatpush1.msra.mxu0 %v637
        %742 = vmatprep.subr.mxu0 0.0
        %743 = vmatpush2.msra.mxu0 0.0
        %744 = vmatprep.subr.mxu0 0.0
        %745 = vmatpush2.msra.mxu0 0.0
        %746 = vmatprep.subr.mxu0 0.0
        %747 = vmatpush2.msra.mxu0 0.0
        %748 = vmatprep.subr.mxu0 0.0
        %749 = vmatpush2.msra.mxu0 0.0
        %750 = vmatprep.subr.mxu0 0.0
        %751 = vmatpush2.msra.mxu0 0.0
        %752 = vmatprep.subr.mxu0 0.0
        %753 = vmatpush2.msra.mxu0 0.0
        %754 = vmatprep.subr.mxu0 0.0
        %755 = vmatpush2.msra.mxu0 0.0
        %756 = vmatprep.subr.mxu0 0.0
        %757 = vmatpush2.msra.mxu0 0.0
        %758 = vmatprep.subr.mxu0 0.0
        %759 = vmatpush2.msra.mxu0 0.0
        %760 = vmatprep.subr.mxu0 0.0
        %761 = vmatpush2.msra.mxu0 0.0
        %762 = vmatprep.subr.mxu0 0.0
        %763 = vmatpush2.msra.mxu0 0.0
        %764 = vmatprep.subr.mxu0 0.0
        %765 = vmatpush2.msra.mxu0 0.0
        %766 = vmatprep.subr.mxu0 0.0
        %767 = vmatpush2.msra.mxu0 0.0
        %768 = vmatprep.subr.mxu0 0.0
        %769 = vmatpush2.msra.mxu0 0.0
        %770 = vmatprep.subr.mxu0 0.0
        %771 = vmatpush2.msra.mxu0 0.0
        %772 = vmatprep.subr.mxu0 0.0
        %773 = vmatpush2.msra.mxu0 0.0
        %774 = vmatprep.mubr.f32.mxu0 0.0
        %775 = vmatmul.mubr.f32.gmra.mxu0 %v631
        %v776 = vpop.f32.mrf.mxu0
        %v777 = vadd.f32 0.0, %v776
        %v778 = vpop.f32.mrf.mxu0
        %779 = vdwg.mxu0
        %v780 = vadd.f32 %v540, %v706
        %v781 = vadd.f32 %v542, %v708
        %v782 = vadd.f32 %v611, %v777
        %v783 = vld [vmem:[%s2] sm:$0xf]
        %785 = vset.pattern.permute.xlu0 0
        %786 = vperm.xlu0 %785, %v783
        %v787 = vpop.permute.xlu0 %786
        %v789 = vadd.f32 %v780, %v787
        %v790 = vadd.f32 %v781, %v787
        %v791 = vadd.f32 %v782, %v787
        %v792 = vsub.f32 0.0, %v789
        %v793 = vsub.f32 0.0, %v790
        %v794 = vsub.f32 0.0, %v791
        %v795 = vmul.f32 %v792, 1.442695
        %v796 = vpow.pop %v795
        %v797 = vmul.f32 %v793, 1.442695
        %v798 = vpow.pop %v797
        %v799 = vmul.f32 %v794, 1.442695
        %v800 = vpow.pop %v799
        %v801 = vadd.f32 %v796, 1.0
        %v802 = vadd.f32 %v798, 1.0
        %v803 = vadd.f32 %v800, 1.0
        %v804 = vrcp.pop %v801
        %v805 = vmul.f32 %v789, %v804
        %v806 = vrcp.pop %v802
        %v807 = vmul.f32 %v790, %v806
        %v808 = vrcp.pop %v803
        %v809 = vmul.f32 %v791, %v808
        %v810 = vlaneseq
        %v811 = vand.u32 %v810, 127
        %v812 = vadd.s32 %v811, 128
        %v813 = vadd.s32 %v811, 256
        %vm814 = vcmp.lt.s32.totalorder %v811, 128
        %vm815 = vcmp.lt.s32.totalorder %v812, 128
        %vm816 = vcmp.lt.s32.totalorder %v813, 128
        %vm817 = vcmp.ge.s32.totalorder %v811, 132
        %vm818 = vcmp.ge.s32.totalorder %v812, 132
        %vm819 = vcmp.ge.s32.totalorder %v813, 132
        %vm820 = vcmp.lt.s32.totalorder %v811, 260
        %vm821 = vcmp.lt.s32.totalorder %v812, 260
        %vm822 = vcmp.lt.s32.totalorder %v813, 260
        %vm823 = vmand %vm817, %vm820
        %vm824 = vmand %vm818, %vm821
        %vm825 = vmand %vm819, %vm822
        %vm826 = vmor %vm814, %vm823
        %vm827 = vmor %vm815, %vm824
        %vm828 = vmor %vm816, %vm825
        %v829 = vsel %vm826, %v805, 0.0
        %v830 = vsel %vm827, %v807, 0.0
        %v831 = vsel %vm828, %v809, 0.0
        %v835 = vcombine.low %v829, %v830
        %836 = vrot.lane.b32.xlu0 %v835, 2
        %v837 = vpop.permute.xlu0 %836
        %838 = vrot.lane.b32.xlu0 %v831, 2
        %v839 = vpop.permute.xlu0 %838
        %v840 = vrot.slane %v837, 4
        %v841 = vsel %vm265, %v840, %v837
        %v842 = vsel %vm265, %v840, %v839
        %vm845 = vcmask 1047556
        %vm846 = vmor %vm845, %vm268
        %847 = vst.msk [vmem:[#allocation3] sm:$0xff] %vm846, %v841
        %vm848 = vcmask 44032
        %849 = vst.msk [vmem:[#allocation3 + $0x8] sm:$0xf] %vm848, %v842
        %v850 = vld [vmem:[%s3] sm:$0xf]
        %v851 = vld [vmem:[#allocation3] sm:$0xff]
        %v852 = vld [vmem:[#allocation3 + $0x8] sm:$0xf]
        %s853 = scalar_lea.vmem %s3, 4
        %v854 = vld [vmem:[%s853] sm:$0xf]
        %v857 = vcombine.high %v851, %v851
        %858 = vrot.lane.b32.xlu0 %v851, 126
        %v859 = vpop.permute.xlu0 %858
        %860 = vrot.lane.b32.xlu0 %v857, 126
        %v861 = vpop.permute.xlu0 %860
        %862 = vrot.lane.b32.xlu0 %v852, 126
        %v863 = vpop.permute.xlu0 %862
        %v864 = vsel %vm309, %v859, %v861
        %v865 = vsel %vm309, %v861, %v863
        %v867 = vsel %vm312, %v854, 0
        %v869 = vsel %vm316, %v864, 0
        %v871 = vsel %vm316, %v865, 0
        %v873 = vsel %vm316, %v863, 0
        %875 = vmatprep.subr.mxu0 0.0
        %876 = vmatpush1.msra.mxu0 0.0
        %877 = vmatprep.subr.mxu0 0.0
        %878 = vmatpush1.msra.mxu0 0.0
        %879 = vmatprep.subr.mxu0 0.0
        %880 = vmatpush1.msra.mxu0 0.0
        %881 = vmatprep.subr.mxu0 0.0
        %882 = vmatpush1.msra.mxu0 0.0
        %883 = vmatprep.subr.mxu0 0.0
        %884 = vmatpush1.msra.mxu0 0.0
        %885 = vmatprep.subr.mxu0 0.0
        %886 = vmatpush1.msra.mxu0 0.0
        %887 = vmatprep.subr.mxu0 0.0
        %888 = vmatpush1.msra.mxu0 0.0
        %889 = vmatprep.subr.mxu0 0.0
        %890 = vmatpush1.msra.mxu0 0.0
        %891 = vmatprep.subr.mxu0 0.0
        %892 = vmatpush1.msra.mxu0 0.0
        %893 = vmatprep.subr.mxu0 0.0
        %894 = vmatpush1.msra.mxu0 0.0
        %895 = vmatprep.subr.mxu0 0.0
        %896 = vmatpush1.msra.mxu0 0.0
        %897 = vmatprep.subr.mxu0 0.0
        %898 = vmatpush1.msra.mxu0 0.0
        %899 = vmatprep.subr.mxu0 0.0
        %900 = vmatpush1.msra.mxu0 0.0
        %901 = vmatprep.subr.mxu0 0.0
        %902 = vmatpush1.msra.mxu0 0.0
        %903 = vmatprep.subr.mxu0 0.0
        %904 = vmatpush1.msra.mxu0 0.0
        %905 = vmatprep.subr.mxu0 %v871
        %906 = vmatpush1.msra.mxu0 %v869
        %907 = vmatprep.subr.mxu0 0.0
        %908 = vmatpush2.msra.mxu0 0.0
        %909 = vmatprep.subr.mxu0 0.0
        %910 = vmatpush2.msra.mxu0 0.0
        %911 = vmatprep.subr.mxu0 0.0
        %912 = vmatpush2.msra.mxu0 0.0
        %913 = vmatprep.subr.mxu0 0.0
        %914 = vmatpush2.msra.mxu0 0.0
        %915 = vmatprep.subr.mxu0 0.0
        %916 = vmatpush2.msra.mxu0 0.0
        %917 = vmatprep.subr.mxu0 0.0
        %918 = vmatpush2.msra.mxu0 0.0
        %919 = vmatprep.subr.mxu0 0.0
        %920 = vmatpush2.msra.mxu0 0.0
        %921 = vmatprep.subr.mxu0 0.0
        %922 = vmatpush2.msra.mxu0 0.0
        %923 = vmatprep.subr.mxu0 0.0
        %924 = vmatpush2.msra.mxu0 0.0
        %925 = vmatprep.subr.mxu0 0.0
        %926 = vmatpush2.msra.mxu0 0.0
        %927 = vmatprep.subr.mxu0 0.0
        %928 = vmatpush2.msra.mxu0 0.0
        %929 = vmatprep.subr.mxu0 0.0
        %930 = vmatpush2.msra.mxu0 0.0
        %931 = vmatprep.subr.mxu0 0.0
        %932 = vmatpush2.msra.mxu0 0.0
        %933 = vmatprep.subr.mxu0 0.0
        %934 = vmatpush2.msra.mxu0 0.0
        %935 = vmatprep.subr.mxu0 0.0
        %936 = vmatpush2.msra.mxu0 0.0
        %937 = vmatprep.subr.mxu0 0.0
        %938 = vmatpush2.msra.mxu0 0.0
        %939 = vmatprep.mubr.f32.mxu0 0.0
        %940 = vmatmul.mubr.f32.gmra.mxu0 %v867
        %v941 = vpop.f32.mrf.mxu0
        %v942 = vadd.f32 0.0, %v941
        %v943 = vpop.f32.mrf.mxu0
        %v944 = vadd.f32 0.0, %v943
        %945 = vdwg.mxu0
        %946 = vmatprep.subr.mxu0 0.0
        %947 = vmatpush1.msra.mxu0 0.0
        %948 = vmatprep.subr.mxu0 0.0
        %949 = vmatpush1.msra.mxu0 0.0
        %950 = vmatprep.subr.mxu0 0.0
        %951 = vmatpush1.msra.mxu0 0.0
        %952 = vmatprep.subr.mxu0 0.0
        %953 = vmatpush1.msra.mxu0 0.0
        %954 = vmatprep.subr.mxu0 0.0
        %955 = vmatpush1.msra.mxu0 0.0
        %956 = vmatprep.subr.mxu0 0.0
        %957 = vmatpush1.msra.mxu0 0.0
        %958 = vmatprep.subr.mxu0 0.0
        %959 = vmatpush1.msra.mxu0 0.0
        %960 = vmatprep.subr.mxu0 0.0
        %961 = vmatpush1.msra.mxu0 0.0
        %962 = vmatprep.subr.mxu0 0.0
        %963 = vmatpush1.msra.mxu0 0.0
        %964 = vmatprep.subr.mxu0 0.0
        %965 = vmatpush1.msra.mxu0 0.0
        %966 = vmatprep.subr.mxu0 0.0
        %967 = vmatpush1.msra.mxu0 0.0
        %968 = vmatprep.subr.mxu0 0.0
        %969 = vmatpush1.msra.mxu0 0.0
        %970 = vmatprep.subr.mxu0 0.0
        %971 = vmatpush1.msra.mxu0 0.0
        %972 = vmatprep.subr.mxu0 0.0
        %973 = vmatpush1.msra.mxu0 0.0
        %974 = vmatprep.subr.mxu0 0.0
        %975 = vmatpush1.msra.mxu0 0.0
        %976 = vmatprep.subr.mxu0 0.0
        %977 = vmatpush1.msra.mxu0 %v873
        %978 = vmatprep.subr.mxu0 0.0
        %979 = vmatpush2.msra.mxu0 0.0
        %980 = vmatprep.subr.mxu0 0.0
        %981 = vmatpush2.msra.mxu0 0.0
        %982 = vmatprep.subr.mxu0 0.0
        %983 = vmatpush2.msra.mxu0 0.0
        %984 = vmatprep.subr.mxu0 0.0
        %985 = vmatpush2.msra.mxu0 0.0
        %986 = vmatprep.subr.mxu0 0.0
        %987 = vmatpush2.msra.mxu0 0.0
        %988 = vmatprep.subr.mxu0 0.0
        %989 = vmatpush2.msra.mxu0 0.0
        %990 = vmatprep.subr.mxu0 0.0
        %991 = vmatpush2.msra.mxu0 0.0
        %992 = vmatprep.subr.mxu0 0.0
        %993 = vmatpush2.msra.mxu0 0.0
        %994 = vmatprep.subr.mxu0 0.0
        %995 = vmatpush2.msra.mxu0 0.0
        %996 = vmatprep.subr.mxu0 0.0
        %997 = vmatpush2.msra.mxu0 0.0
        %998 = vmatprep.subr.mxu0 0.0
        %999 = vmatpush2.msra.mxu0 0.0
        %1000 = vmatprep.subr.mxu0 0.0
        %1001 = vmatpush2.msra.mxu0 0.0
        %1002 = vmatprep.subr.mxu0 0.0
        %1003 = vmatpush2.msra.mxu0 0.0
        %1004 = vmatprep.subr.mxu0 0.0
        %1005 = vmatpush2.msra.mxu0 0.0
        %1006 = vmatprep.subr.mxu0 0.0
        %1007 = vmatpush2.msra.mxu0 0.0
        %1008 = vmatprep.subr.mxu0 0.0
        %1009 = vmatpush2.msra.mxu0 0.0
        %1010 = vmatprep.mubr.f32.mxu0 0.0
        %1011 = vmatmul.mubr.f32.gmra.mxu0 %v867
        %v1012 = vpop.f32.mrf.mxu0
        %v1013 = vadd.f32 0.0, %v1012
        %v1014 = vpop.f32.mrf.mxu0
        %1015 = vdwg.mxu0
        %v1017 = vsel %vm312, %v850, 0
        %v1019 = vsel %vm316, %v851, 0
        %v1021 = vsel %vm316, %v857, 0
        %v1023 = vsel %vm316, %v852, 0
        %1025 = vmatprep.subr.mxu0 0.0
        %1026 = vmatpush1.msra.mxu0 0.0
        %1027 = vmatprep.subr.mxu0 0.0
        %1028 = vmatpush1.msra.mxu0 0.0
        %1029 = vmatprep.subr.mxu0 0.0
        %1030 = vmatpush1.msra.mxu0 0.0
        %1031 = vmatprep.subr.mxu0 0.0
        %1032 = vmatpush1.msra.mxu0 0.0
        %1033 = vmatprep.subr.mxu0 0.0
        %1034 = vmatpush1.msra.mxu0 0.0
        %1035 = vmatprep.subr.mxu0 0.0
        %1036 = vmatpush1.msra.mxu0 0.0
        %1037 = vmatprep.subr.mxu0 0.0
        %1038 = vmatpush1.msra.mxu0 0.0
        %1039 = vmatprep.subr.mxu0 0.0
        %1040 = vmatpush1.msra.mxu0 0.0
        %1041 = vmatprep.subr.mxu0 0.0
        %1042 = vmatpush1.msra.mxu0 0.0
        %1043 = vmatprep.subr.mxu0 0.0
        %1044 = vmatpush1.msra.mxu0 0.0
        %1045 = vmatprep.subr.mxu0 0.0
        %1046 = vmatpush1.msra.mxu0 0.0
        %1047 = vmatprep.subr.mxu0 0.0
        %1048 = vmatpush1.msra.mxu0 0.0
        %1049 = vmatprep.subr.mxu0 0.0
        %1050 = vmatpush1.msra.mxu0 0.0
        %1051 = vmatprep.subr.mxu0 0.0
        %1052 = vmatpush1.msra.mxu0 0.0
        %1053 = vmatprep.subr.mxu0 0.0
        %1054 = vmatpush1.msra.mxu0 0.0
        %1055 = vmatprep.subr.mxu0 %v1021
        %1056 = vmatpush1.msra.mxu0 %v1019
        %1057 = vmatprep.subr.mxu0 0.0
        %1058 = vmatpush2.msra.mxu0 0.0
        %1059 = vmatprep.subr.mxu0 0.0
        %1060 = vmatpush2.msra.mxu0 0.0
        %1061 = vmatprep.subr.mxu0 0.0
        %1062 = vmatpush2.msra.mxu0 0.0
        %1063 = vmatprep.subr.mxu0 0.0
        %1064 = vmatpush2.msra.mxu0 0.0
        %1065 = vmatprep.subr.mxu0 0.0
        %1066 = vmatpush2.msra.mxu0 0.0
        %1067 = vmatprep.subr.mxu0 0.0
        %1068 = vmatpush2.msra.mxu0 0.0
        %1069 = vmatprep.subr.mxu0 0.0
        %1070 = vmatpush2.msra.mxu0 0.0
        %1071 = vmatprep.subr.mxu0 0.0
        %1072 = vmatpush2.msra.mxu0 0.0
        %1073 = vmatprep.subr.mxu0 0.0
        %1074 = vmatpush2.msra.mxu0 0.0
        %1075 = vmatprep.subr.mxu0 0.0
        %1076 = vmatpush2.msra.mxu0 0.0
        %1077 = vmatprep.subr.mxu0 0.0
        %1078 = vmatpush2.msra.mxu0 0.0
        %1079 = vmatprep.subr.mxu0 0.0
        %1080 = vmatpush2.msra.mxu0 0.0
        %1081 = vmatprep.subr.mxu0 0.0
        %1082 = vmatpush2.msra.mxu0 0.0
        %1083 = vmatprep.subr.mxu0 0.0
        %1084 = vmatpush2.msra.mxu0 0.0
        %1085 = vmatprep.subr.mxu0 0.0
        %1086 = vmatpush2.msra.mxu0 0.0
        %1087 = vmatprep.subr.mxu0 0.0
        %1088 = vmatpush2.msra.mxu0 0.0
        %1089 = vmatprep.mubr.f32.mxu0 0.0
        %1090 = vmatmul.mubr.f32.gmra.mxu0 %v1017
        %v1091 = vpop.f32.mrf.mxu0
        %v1092 = vadd.f32 %v942, %v1091
        %v1093 = vpop.f32.mrf.mxu0
        %v1094 = vadd.f32 %v944, %v1093
        %1095 = vdwg.mxu0
        %1096 = vmatprep.subr.mxu0 0.0
        %1097 = vmatpush1.msra.mxu0 0.0
        %1098 = vmatprep.subr.mxu0 0.0
        %1099 = vmatpush1.msra.mxu0 0.0
        %1100 = vmatprep.subr.mxu0 0.0
        %1101 = vmatpush1.msra.mxu0 0.0
        %1102 = vmatprep.subr.mxu0 0.0
        %1103 = vmatpush1.msra.mxu0 0.0
        %1104 = vmatprep.subr.mxu0 0.0
        %1105 = vmatpush1.msra.mxu0 0.0
        %1106 = vmatprep.subr.mxu0 0.0
        %1107 = vmatpush1.msra.mxu0 0.0
        %1108 = vmatprep.subr.mxu0 0.0
        %1109 = vmatpush1.msra.mxu0 0.0
        %1110 = vmatprep.subr.mxu0 0.0
        %1111 = vmatpush1.msra.mxu0 0.0
        %1112 = vmatprep.subr.mxu0 0.0
        %1113 = vmatpush1.msra.mxu0 0.0
        %1114 = vmatprep.subr.mxu0 0.0
        %1115 = vmatpush1.msra.mxu0 0.0
        %1116 = vmatprep.subr.mxu0 0.0
        %1117 = vmatpush1.msra.mxu0 0.0
        %1118 = vmatprep.subr.mxu0 0.0
        %1119 = vmatpush1.msra.mxu0 0.0
        %1120 = vmatprep.subr.mxu0 0.0
        %1121 = vmatpush1.msra.mxu0 0.0
        %1122 = vmatprep.subr.mxu0 0.0
        %1123 = vmatpush1.msra.mxu0 0.0
        %1124 = vmatprep.subr.mxu0 0.0
        %1125 = vmatpush1.msra.mxu0 0.0
        %1126 = vmatprep.subr.mxu0 0.0
        %1127 = vmatpush1.msra.mxu0 %v1023
        %1128 = vmatprep.subr.mxu0 0.0
        %1129 = vmatpush2.msra.mxu0 0.0
        %1130 = vmatprep.subr.mxu0 0.0
        %1131 = vmatpush2.msra.mxu0 0.0
        %1132 = vmatprep.subr.mxu0 0.0
        %1133 = vmatpush2.msra.mxu0 0.0
        %1134 = vmatprep.subr.mxu0 0.0
        %1135 = vmatpush2.msra.mxu0 0.0
        %1136 = vmatprep.subr.mxu0 0.0
        %1137 = vmatpush2.msra.mxu0 0.0
        %1138 = vmatprep.subr.mxu0 0.0
        %1139 = vmatpush2.msra.mxu0 0.0
        %1140 = vmatprep.subr.mxu0 0.0
        %1141 = vmatpush2.msra.mxu0 0.0
        %1142 = vmatprep.subr.mxu0 0.0
        %1143 = vmatpush2.msra.mxu0 0.0
        %1144 = vmatprep.subr.mxu0 0.0
        %1145 = vmatpush2.msra.mxu0 0.0
        %1146 = vmatprep.subr.mxu0 0.0
        %1147 = vmatpush2.msra.mxu0 0.0
        %1148 = vmatprep.subr.mxu0 0.0
        %1149 = vmatpush2.msra.mxu0 0.0
        %1150 = vmatprep.subr.mxu0 0.0
        %1151 = vmatpush2.msra.mxu0 0.0
        %1152 = vmatprep.subr.mxu0 0.0
        %1153 = vmatpush2.msra.mxu0 0.0
        %1154 = vmatprep.subr.mxu0 0.0
        %1155 = vmatpush2.msra.mxu0 0.0
        %1156 = vmatprep.subr.mxu0 0.0
        %1157 = vmatpush2.msra.mxu0 0.0
        %1158 = vmatprep.subr.mxu0 0.0
        %1159 = vmatpush2.msra.mxu0 0.0
        %1160 = vmatprep.mubr.f32.mxu0 0.0
        %1161 = vmatmul.mubr.f32.gmra.mxu0 %v1017
        %v1162 = vpop.f32.mrf.mxu0
        %v1163 = vadd.f32 %v1013, %v1162
        %v1164 = vpop.f32.mrf.mxu0
        %1165 = vdwg.mxu0
        %s1166 = scalar_lea.vmem %s3, 8
        %v1167 = vld [vmem:[%s1166] sm:$0xf]
        %v1168 = vld [vmem:[#allocation3] sm:$0xff]
        %v1169 = vld [vmem:[#allocation3 + $0x8] sm:$0xf]
        %v1172 = vcombine.high %v1168, %v1168
        %1173 = vrot.lane.b32.xlu0 %v1168, 124
        %v1174 = vpop.permute.xlu0 %1173
        %1175 = vrot.lane.b32.xlu0 %v1172, 124
        %v1176 = vpop.permute.xlu0 %1175
        %1177 = vrot.lane.b32.xlu0 %v1169, 124
        %v1178 = vpop.permute.xlu0 %1177
        %v1179 = vsel %vm627, %v1174, %v1176
        %v1180 = vsel %vm627, %v1176, %v1178
        %v1182 = vsel %vm312, %v1167, 0
        %v1184 = vsel %vm316, %v1179, 0
        %v1186 = vsel %vm316, %v1180, 0
        %v1188 = vsel %vm316, %v1178, 0
        %1190 = vmatprep.subr.mxu0 0.0
        %1191 = vmatpush1.msra.mxu0 0.0
        %1192 = vmatprep.subr.mxu0 0.0
        %1193 = vmatpush1.msra.mxu0 0.0
        %1194 = vmatprep.subr.mxu0 0.0
        %1195 = vmatpush1.msra.mxu0 0.0
        %1196 = vmatprep.subr.mxu0 0.0
        %1197 = vmatpush1.msra.mxu0 0.0
        %1198 = vmatprep.subr.mxu0 0.0
        %1199 = vmatpush1.msra.mxu0 0.0
        %1200 = vmatprep.subr.mxu0 0.0
        %1201 = vmatpush1.msra.mxu0 0.0
        %1202 = vmatprep.subr.mxu0 0.0
        %1203 = vmatpush1.msra.mxu0 0.0
        %1204 = vmatprep.subr.mxu0 0.0
        %1205 = vmatpush1.msra.mxu0 0.0
        %1206 = vmatprep.subr.mxu0 0.0
        %1207 = vmatpush1.msra.mxu0 0.0
        %1208 = vmatprep.subr.mxu0 0.0
        %1209 = vmatpush1.msra.mxu0 0.0
        %1210 = vmatprep.subr.mxu0 0.0
        %1211 = vmatpush1.msra.mxu0 0.0
        %1212 = vmatprep.subr.mxu0 0.0
        %1213 = vmatpush1.msra.mxu0 0.0
        %1214 = vmatprep.subr.mxu0 0.0
        %1215 = vmatpush1.msra.mxu0 0.0
        %1216 = vmatprep.subr.mxu0 0.0
        %1217 = vmatpush1.msra.mxu0 0.0
        %1218 = vmatprep.subr.mxu0 0.0
        %1219 = vmatpush1.msra.mxu0 0.0
        %1220 = vmatprep.subr.mxu0 %v1186
        %1221 = vmatpush1.msra.mxu0 %v1184
        %1222 = vmatprep.subr.mxu0 0.0
        %1223 = vmatpush2.msra.mxu0 0.0
        %1224 = vmatprep.subr.mxu0 0.0
        %1225 = vmatpush2.msra.mxu0 0.0
        %1226 = vmatprep.subr.mxu0 0.0
        %1227 = vmatpush2.msra.mxu0 0.0
        %1228 = vmatprep.subr.mxu0 0.0
        %1229 = vmatpush2.msra.mxu0 0.0
        %1230 = vmatprep.subr.mxu0 0.0
        %1231 = vmatpush2.msra.mxu0 0.0
        %1232 = vmatprep.subr.mxu0 0.0
        %1233 = vmatpush2.msra.mxu0 0.0
        %1234 = vmatprep.subr.mxu0 0.0
        %1235 = vmatpush2.msra.mxu0 0.0
        %1236 = vmatprep.subr.mxu0 0.0
        %1237 = vmatpush2.msra.mxu0 0.0
        %1238 = vmatprep.subr.mxu0 0.0
        %1239 = vmatpush2.msra.mxu0 0.0
        %1240 = vmatprep.subr.mxu0 0.0
        %1241 = vmatpush2.msra.mxu0 0.0
        %1242 = vmatprep.subr.mxu0 0.0
        %1243 = vmatpush2.msra.mxu0 0.0
        %1244 = vmatprep.subr.mxu0 0.0
        %1245 = vmatpush2.msra.mxu0 0.0
        %1246 = vmatprep.subr.mxu0 0.0
        %1247 = vmatpush2.msra.mxu0 0.0
        %1248 = vmatprep.subr.mxu0 0.0
        %1249 = vmatpush2.msra.mxu0 0.0
        %1250 = vmatprep.subr.mxu0 0.0
        %1251 = vmatpush2.msra.mxu0 0.0
        %1252 = vmatprep.subr.mxu0 0.0
        %1253 = vmatpush2.msra.mxu0 0.0
        %1254 = vmatprep.mubr.f32.mxu0 0.0
        %1255 = vmatmul.mubr.f32.gmra.mxu0 %v1182
        %v1256 = vpop.f32.mrf.mxu0
        %v1257 = vadd.f32 0.0, %v1256
        %v1258 = vpop.f32.mrf.mxu0
        %v1259 = vadd.f32 0.0, %v1258
        %1260 = vdwg.mxu0
        %1261 = vmatprep.subr.mxu0 0.0
        %1262 = vmatpush1.msra.mxu0 0.0
        %1263 = vmatprep.subr.mxu0 0.0
        %1264 = vmatpush1.msra.mxu0 0.0
        %1265 = vmatprep.subr.mxu0 0.0
        %1266 = vmatpush1.msra.mxu0 0.0
        %1267 = vmatprep.subr.mxu0 0.0
        %1268 = vmatpush1.msra.mxu0 0.0
        %1269 = vmatprep.subr.mxu0 0.0
        %1270 = vmatpush1.msra.mxu0 0.0
        %1271 = vmatprep.subr.mxu0 0.0
        %1272 = vmatpush1.msra.mxu0 0.0
        %1273 = vmatprep.subr.mxu0 0.0
        %1274 = vmatpush1.msra.mxu0 0.0
        %1275 = vmatprep.subr.mxu0 0.0
        %1276 = vmatpush1.msra.mxu0 0.0
        %1277 = vmatprep.subr.mxu0 0.0
        %1278 = vmatpush1.msra.mxu0 0.0
        %1279 = vmatprep.subr.mxu0 0.0
        %1280 = vmatpush1.msra.mxu0 0.0
        %1281 = vmatprep.subr.mxu0 0.0
        %1282 = vmatpush1.msra.mxu0 0.0
        %1283 = vmatprep.subr.mxu0 0.0
        %1284 = vmatpush1.msra.mxu0 0.0
        %1285 = vmatprep.subr.mxu0 0.0
        %1286 = vmatpush1.msra.mxu0 0.0
        %1287 = vmatprep.subr.mxu0 0.0
        %1288 = vmatpush1.msra.mxu0 0.0
        %1289 = vmatprep.subr.mxu0 0.0
        %1290 = vmatpush1.msra.mxu0 0.0
        %1291 = vmatprep.subr.mxu0 0.0
        %1292 = vmatpush1.msra.mxu0 %v1188
        %1293 = vmatprep.subr.mxu0 0.0
        %1294 = vmatpush2.msra.mxu0 0.0
        %1295 = vmatprep.subr.mxu0 0.0
        %1296 = vmatpush2.msra.mxu0 0.0
        %1297 = vmatprep.subr.mxu0 0.0
        %1298 = vmatpush2.msra.mxu0 0.0
        %1299 = vmatprep.subr.mxu0 0.0
        %1300 = vmatpush2.msra.mxu0 0.0
        %1301 = vmatprep.subr.mxu0 0.0
        %1302 = vmatpush2.msra.mxu0 0.0
        %1303 = vmatprep.subr.mxu0 0.0
        %1304 = vmatpush2.msra.mxu0 0.0
        %1305 = vmatprep.subr.mxu0 0.0
        %1306 = vmatpush2.msra.mxu0 0.0
        %1307 = vmatprep.subr.mxu0 0.0
        %1308 = vmatpush2.msra.mxu0 0.0
        %1309 = vmatprep.subr.mxu0 0.0
        %1310 = vmatpush2.msra.mxu0 0.0
        %1311 = vmatprep.subr.mxu0 0.0
        %1312 = vmatpush2.msra.mxu0 0.0
        %1313 = vmatprep.subr.mxu0 0.0
        %1314 = vmatpush2.msra.mxu0 0.0
        %1315 = vmatprep.subr.mxu0 0.0
        %1316 = vmatpush2.msra.mxu0 0.0
        %1317 = vmatprep.subr.mxu0 0.0
        %1318 = vmatpush2.msra.mxu0 0.0
        %1319 = vmatprep.subr.mxu0 0.0
        %1320 = vmatpush2.msra.mxu0 0.0
        %1321 = vmatprep.subr.mxu0 0.0
        %1322 = vmatpush2.msra.mxu0 0.0
        %1323 = vmatprep.subr.mxu0 0.0
        %1324 = vmatpush2.msra.mxu0 0.0
        %1325 = vmatprep.mubr.f32.mxu0 0.0
        %1326 = vmatmul.mubr.f32.gmra.mxu0 %v1182
        %v1327 = vpop.f32.mrf.mxu0
        %v1328 = vadd.f32 0.0, %v1327
        %v1329 = vpop.f32.mrf.mxu0
        %1330 = vdwg.mxu0
        %v1331 = vadd.f32 %v1092, %v1257
        %v1332 = vadd.f32 %v1094, %v1259
        %v1333 = vadd.f32 %v1163, %v1328
        %v1334 = vld [vmem:[%s4] sm:$0xf]
        %1336 = vset.pattern.permute.xlu0 0
        %1337 = vperm.xlu0 %1336, %v1334
        %v1338 = vpop.permute.xlu0 %1337
        %v1340 = vadd.f32 %v1331, %v1338
        %v1341 = vadd.f32 %v1332, %v1338
        %v1342 = vadd.f32 %v1333, %v1338
        %v1343 = vld [vmem:[%s227] sm:$0xf]
        %v1344 = vadd.f32 %v1340, %v1343
        %1345 = vst [vmem:[%s257] sm:$0xf] %v1344
        %v1346 = vld [vmem:[%s272] sm:$0xf]
        %1348 = vrot.lane.b32.xlu0 %v1346, 4
        %v1349 = vpop.permute.xlu0 %1348
        %v1351 = vadd.f32 %v1341, %v1349
        %v1352 = vadd.f32 %v1342, %v1349
        %1355 = vrot.lane.b32.xlu0 %v1351, 124
        %v1356 = vpop.permute.xlu0 %1355
        %1357 = vrot.lane.b32.xlu0 %v1352, 124
        %v1358 = vpop.permute.xlu0 %1357
        %v1359 = vsel %vm627, %v1356, %v1358
        %s1361 = scalar_lea.vmem %s257, 4 [#allocation9]
        %1362 = vst [vmem:[%s1361] sm:$0xf] %v1359
        %s1363 = sand.u32 %s141, 1
        %s1364 = scalar_lea.sflag [#allocation6], %s1363
        %s1365 = sand.u32 %s141, 1
        %s1366 = smul.addr %s1365, 8
        %s1367 = scalar_lea.vmem [#allocation9], %s1366
        // Predicated region
        $region49: #{tpu_custom_call.1} parent=39 // pred_check
          %p1368 = pneg %p151
        $region50: #{tpu_custom_call.1} parent=39 // pred_check_branch
          %1370 = sbr.rel (%p1368) target = $region52
        $region51: #{tpu_custom_call.1} parent=39 // pred_region
          %s1371 = smul.u32 2, %s23
          %s1373 = ssub.s32 128, 128
          %1374 = vsyncadd %s1364, %s1373
          %s1375 = smul.addr %s1371, 64
          %s1376 = scalar_lea.hbm %s5, %s1375
          %s1377 = sshll.u32 %s1367, 4
          %s1378 = int_to_ptr.vmem [resolvable:$true] %s1377
          %1383 = dma.vmem_to_hbm [thread:$0]  %s1378, 128, %s1376, %s1364, 64, 64, 4
        $region52: #{tpu_custom_call.1} parent=39 // pred_fallthru
          _
      $region40: #{tpu_custom_call.1} parent=5 // pred_fallthru
        _
      %p1384 = scmp.le.s32.totalorder 2, %s18
      // Predicated region
      $region53: #{tpu_custom_call.1} parent=5 // pred_check
        %p1385 = pneg %p1384
      $region54: #{tpu_custom_call.1} parent=5 // pred_check_branch
        %1387 = sbr.rel (%p1385) target = $region56
      $region55: #{tpu_custom_call.1} parent=5 // pred_region
        %s1388 = ssub.s32 %s18, 2
        // Predicated region
        $region57: #{tpu_custom_call.1} parent=55 // pred_check
          %p1389 = pneg %p157
        $region58: #{tpu_custom_call.1} parent=55 // pred_check_branch
          %1391 = sbr.rel (%p1389) target = $region60
        $region59: #{tpu_custom_call.1} parent=55 // pred_region
          %s1392 = sand.u32 %s142, 1
          %s1393 = scalar_lea.sflag [#allocation6], %s1392
          %s1394 = sand.u32 %s142, 1
          %s1395 = smul.addr %s1394, 8
          %s1396 = scalar_lea.vmem [#allocation9], %s1395
          %1397 = dma.done %s1393, 128
        $region60: #{tpu_custom_call.1} parent=55 // pred_fallthru
          _
      $region56: #{tpu_custom_call.1} parent=5 // pred_fallthru
        _
    $region6: #{tpu_custom_call.1} parent=1 // loop_footer
      %s22 = sadd.s32 1, %s18
    $region7: #{tpu_custom_call.1} parent=1 // loop_footer_branch
      %17 = sbr.rel target = $region3
    $region8: #{tpu_custom_call.1} parent=1 // loop_exit
      _
    %1398 = vsyncpa [#allocation5], 1
    %s1399 = scalar_lea.sflag [#allocation5], 1
    %1400 = vsyncpa %s1399, 1
    %1401 = vsyncpa [#allocation8], 1
    %1402 = vsyncpa [#allocation6], 1
    %s1403 = scalar_lea.sflag [#allocation6], 1
    %1404 = vsyncpa %s1403, 1

</llo_original>
